<compile_context>
chip_gen: v7x
topology: tpu7x:2x2x1
jax: 0.10.0
libtpu: 0.0.40
codegen_flags: <defaults>
</compile_context>

<pallas_src>
import functools
import math

import jax
import jax.numpy as jnp
from jax import lax
from jax.experimental import pallas as pl
from jax.experimental.pallas import tpu as pltpu


def _mha_kernel(q_ref, k_ref, v_ref, mask_ref, bq_ref, bk_ref, bv_ref,
                wo_ref, bo_ref, o_ref, *, heads, head_dim, scale):
    """One batch element: projections + per-head attention + fc_out, fused."""
    q = q_ref[0]                     # (Lq, E)
    k = k_ref[0]                     # (Lk, E)
    v = v_ref[0]                     # (Lv, E)
    masked = mask_ref[0] == 0        # (Lq, Lk) bool, int32 mask from host

    # Per-head linear projections applied with block-diagonal (E, E) weights
    # (already transposed on the host) -> one lane-dense matmul per tensor.
    # The 1/sqrt(E) scale is folded into the smaller Q projection.
    qp = jnp.dot(q, bq_ref[...], preferred_element_type=jnp.float32) * scale
    kp = jnp.dot(k, bk_ref[...], preferred_element_type=jnp.float32)
    vp = jnp.dot(v, bv_ref[...], preferred_element_type=jnp.float32)

    neg = jnp.float32(-1e20)
    head_outs = []
    for h in range(heads):           # static unroll: all heads in one program
        lo = h * head_dim
        hi = lo + head_dim
        qh = qp[:, lo:hi]            # (Lq, D) static lane slices
        kh = kp[:, lo:hi]
        vh = vp[:, lo:hi]
        # scores = qh @ kh^T without an in-kernel transpose: contract dim 1/1.
        e = lax.dot_general(qh, kh, (((1,), (1,)), ((), ())),
                            preferred_element_type=jnp.float32)   # (Lq, Lk)
        # masked_fill(mask == 0, -1e20); softmax is shift-invariant so the
        # post-scale fill value is numerically equivalent to the torch order.
        e = jnp.where(masked, neg, e)
        emax = jnp.max(e, axis=-1, keepdims=True)
        p = jnp.exp(e - emax)
        denom = jnp.sum(p, axis=-1, keepdims=True)
        attn = p * pl.reciprocal(denom, approx=True)              # EUP divide
        head_outs.append(jnp.dot(attn, vh, preferred_element_type=jnp.float32))

    ctx = jnp.concatenate(head_outs, axis=-1)                     # (Lq, E) lane-dense
    out = jnp.dot(ctx, wo_ref[...], preferred_element_type=jnp.float32) + bo_ref[...]
    o_ref[0] = out.astype(o_ref.dtype)


def _block_diag_T(w, heads):
    """torch Linear weight (out, in) applied per head -> block-diag of W.T.

    Lets a single (L, E) @ (E, E) matmul apply the per-head projection to
    every head slice of the lane axis at once.
    """
    return jnp.kron(jnp.eye(heads, dtype=w.dtype), w.T)


def multi_head_attention(values, keys, query, mask, params, heads):
    """values/keys/query: (N, L, E) float32; mask: (N, Lq, Lk) (nonzero = keep)."""
    wq, wk, wv, w_out, b_out = params
    N, Lq, E = query.shape
    Lk = keys.shape[1]
    Lv = values.shape[1]
    D = E // heads
    assert D * heads == E
    assert Lk == Lv

    # Host-side (one-time) weight prep: block-diagonal per-head projections,
    # pre-transposed fc_out weight, int mask (avoid float == 0 brittleness).
    bq = _block_diag_T(wq, heads)
    bk = _block_diag_T(wk, heads)
    bv = _block_diag_T(wv, heads)
    wo_t = w_out.T
    bo = b_out.reshape(1, E)
    mask_i = (mask != 0).astype(jnp.int32)

    scale = 1.0 / math.sqrt(E)
    kernel = functools.partial(_mha_kernel, heads=heads, head_dim=D, scale=scale)

    out = pl.pallas_call(
        kernel,
        out_shape=jax.ShapeDtypeStruct((N, Lq, E), jnp.float32),
        grid=(N,),
        in_specs=[
            pl.BlockSpec((1, Lq, E), lambda n: (n, 0, 0)),    # query
            pl.BlockSpec((1, Lk, E), lambda n: (n, 0, 0)),    # keys
            pl.BlockSpec((1, Lv, E), lambda n: (n, 0, 0)),    # values
            pl.BlockSpec((1, Lq, Lk), lambda n: (n, 0, 0)),   # mask
            pl.BlockSpec((E, E), lambda n: (0, 0)),           # block-diag Wq^T
            pl.BlockSpec((E, E), lambda n: (0, 0)),           # block-diag Wk^T
            pl.BlockSpec((E, E), lambda n: (0, 0)),           # block-diag Wv^T
            pl.BlockSpec((E, E), lambda n: (0, 0)),           # fc_out W^T
            pl.BlockSpec((1, E), lambda n: (0, 0)),           # fc_out bias
        ],
        out_specs=pl.BlockSpec((1, Lq, E), lambda n: (n, 0, 0)),
        compiler_params=pltpu.CompilerParams(
            dimension_semantics=("parallel",)),
    )(query, keys, values, mask_i, bq, bk, bv, wo_t, bo)
    return out


def _reference(values, keys, query, mask, params, heads):
    """Pure-JAX reference mirroring the torch forward exactly."""
    wq, wk, wv, w_out, b_out = params
    N, Lq, E = query.shape
    Lk = keys.shape[1]
    D = E // heads
    v = values.reshape(N, Lk, heads, D) @ wv.T
    k = keys.reshape(N, Lk, heads, D) @ wk.T
    q = query.reshape(N, Lq, heads, D) @ wq.T
    energy = jnp.einsum("nqhd,nkhd->nhqk", q, k)
    energy = jnp.where(mask[:, None, :, :] == 0, -1e20, energy)
    attn = jax.nn.softmax(energy / math.sqrt(E), axis=-1)
    out = jnp.einsum("nhqk,nkhd->nqhd", attn, v).reshape(N, Lq, E)
    return out @ w_out.T + b_out


if __name__ == "__main__":
    embed_size = 32
    heads = 4
    head_dim = embed_size // heads
    N, seq = 2, 8

    key = jax.random.PRNGKey(0)
    ks = jax.random.split(key, 9)

    # Deterministic synthetic parameters (shapes follow nn.Linear: (out, in)).
    lim_h = 1.0 / math.sqrt(head_dim)
    lim_e = 1.0 / math.sqrt(embed_size)
    wq = jax.random.uniform(ks[0], (head_dim, head_dim), jnp.float32, -lim_h, lim_h)
    wk = jax.random.uniform(ks[1], (head_dim, head_dim), jnp.float32, -lim_h, lim_h)
    wv = jax.random.uniform(ks[2], (head_dim, head_dim), jnp.float32, -lim_h, lim_h)
    w_out = jax.random.uniform(ks[3], (embed_size, embed_size), jnp.float32, -lim_e, lim_e)
    b_out = jax.random.uniform(ks[4], (embed_size,), jnp.float32, -lim_e, lim_e)
    params = (wq, wk, wv, w_out, b_out)

    values = jax.random.normal(ks[5], (N, seq, embed_size), jnp.float32)
    keys_in = jax.random.normal(ks[6], (N, seq, embed_size), jnp.float32)
    query = jax.random.normal(ks[7], (N, seq, embed_size), jnp.float32)

    # Padding-style mask: batch 0 sees all keys, batch 1 sees first 6 keys.
    lengths = jnp.array([seq, 6], dtype=jnp.int32)
    key_valid = (jnp.arange(seq)[None, :] < lengths[:, None]).astype(jnp.float32)  # (N, Lk)
    mask = jnp.broadcast_to(key_valid[:, None, :], (N, seq, seq))                  # (N, Lq, Lk)

    out = multi_head_attention(values, keys_in, query, mask, params, heads)
    out = jax.block_until_ready(out)

    ref = _reference(values, keys_in, query, mask, params, heads)
    assert out.shape == (N, seq, embed_size)
    # Tolerance covers the approximate EUP reciprocal in the softmax divide.
    assert jnp.allclose(out, ref, atol=2e-3, rtol=2e-3), "mismatch vs reference"

    print("KERNEL_OK")
</pallas_src>

<mosaic_0001>
module attributes {stable_mosaic.version = 11 : i64} {
  func.func @_mha_kernel(%arg0: i32, %arg1: memref<1x8x32xf32, #tpu.memory_space<vmem>>, %arg2: memref<1x8x32xf32, #tpu.memory_space<vmem>>, %arg3: memref<1x8x32xf32, #tpu.memory_space<vmem>>, %arg4: memref<1x8x8xi32, #tpu.memory_space<vmem>>, %arg5: memref<32x32xf32, #tpu.memory_space<vmem>>, %arg6: memref<32x32xf32, #tpu.memory_space<vmem>>, %arg7: memref<32x32xf32, #tpu.memory_space<vmem>>, %arg8: memref<32x32xf32, #tpu.memory_space<vmem>>, %arg9: memref<1x32xf32, #tpu.memory_space<vmem>>, %arg10: memref<1x8x32xf32, #tpu.memory_space<vmem>>) attributes {dimension_semantics = [#tpu.dimension_semantics<parallel>], iteration_bounds = array<i64: 2>, scalar_prefetch = 0 : i64, scratch_operands = 0 : i64, tpu.core_type = #tpu.core_type<tc>, window_params = [{transform_indices = @transform_0, window_bounds = array<i64: 1, 8, 32>}, {transform_indices = @transform_1, window_bounds = array<i64: 1, 8, 32>}, {transform_indices = @transform_2, window_bounds = array<i64: 1, 8, 32>}, {transform_indices = @transform_3, window_bounds = array<i64: 1, 8, 8>}, {pipeline_mode = #tpu.pipeline_mode<synchronous>, transform_indices = @transform_4, window_bounds = array<i64: 32, 32>}, {pipeline_mode = #tpu.pipeline_mode<synchronous>, transform_indices = @transform_5, window_bounds = array<i64: 32, 32>}, {pipeline_mode = #tpu.pipeline_mode<synchronous>, transform_indices = @transform_6, window_bounds = array<i64: 32, 32>}, {pipeline_mode = #tpu.pipeline_mode<synchronous>, transform_indices = @transform_7, window_bounds = array<i64: 32, 32>}, {pipeline_mode = #tpu.pipeline_mode<synchronous>, transform_indices = @transform_8, window_bounds = array<i64: 1, 32>}, {transform_indices = @transform_9, window_bounds = array<i64: 1, 8, 32>}]} {
    %c0 = arith.constant 0 : index
    %c0_0 = arith.constant 0 : index
    %c0_1 = arith.constant 0 : index
    %0 = vector.load %arg1[%c0, %c0_0, %c0_1] : memref<1x8x32xf32, #tpu.memory_space<vmem>>, vector<1x8x32xf32>
    %1 = vector.shape_cast %0 : vector<1x8x32xf32> to vector<8x32xf32>
    %c0_2 = arith.constant 0 : index
    %c0_3 = arith.constant 0 : index
    %c0_4 = arith.constant 0 : index
    %2 = vector.load %arg2[%c0_2, %c0_3, %c0_4] : memref<1x8x32xf32, #tpu.memory_space<vmem>>, vector<1x8x32xf32>
    %3 = vector.shape_cast %2 : vector<1x8x32xf32> to vector<8x32xf32>
    %c0_5 = arith.constant 0 : index
    %c0_6 = arith.constant 0 : index
    %c0_7 = arith.constant 0 : index
    %4 = vector.load %arg3[%c0_5, %c0_6, %c0_7] : memref<1x8x32xf32, #tpu.memory_space<vmem>>, vector<1x8x32xf32>
    %5 = vector.shape_cast %4 : vector<1x8x32xf32> to vector<8x32xf32>
    %c0_8 = arith.constant 0 : index
    %c0_9 = arith.constant 0 : index
    %c0_10 = arith.constant 0 : index
    %6 = vector.load %arg4[%c0_8, %c0_9, %c0_10] : memref<1x8x8xi32, #tpu.memory_space<vmem>>, vector<1x8x8xi32>
    %7 = vector.shape_cast %6 : vector<1x8x8xi32> to vector<8x8xi32>
    %c0_i32 = arith.constant 0 : i32
    %8 = vector.broadcast %c0_i32 : i32 to vector<8x8xi32>
    %9 = arith.cmpi eq, %7, %8 : vector<8x8xi32>
    %c0_11 = arith.constant 0 : index
    %c0_12 = arith.constant 0 : index
    %10 = vector.load %arg5[%c0_11, %c0_12] : memref<32x32xf32, #tpu.memory_space<vmem>>, vector<32x32xf32>
    %cst = arith.constant dense<0.000000e+00> : vector<8x32xf32>
    %11 = tpu.matmul %1, %10, %cst {dimension_numbers = #tpu.dot_dimension_numbers<[1], [0], [0], [1], [0, 0, 1, 1], [], []>} : vector<8x32xf32>, vector<32x32xf32>, vector<8x32xf32> -> vector<8x32xf32>
    %cst_13 = arith.constant 0.176776692 : f32
    %12 = vector.broadcast %cst_13 : f32 to vector<8x32xf32>
    %13 = arith.mulf %11, %12 : vector<8x32xf32>
    %c0_14 = arith.constant 0 : index
    %c0_15 = arith.constant 0 : index
    %14 = vector.load %arg6[%c0_14, %c0_15] : memref<32x32xf32, #tpu.memory_space<vmem>>, vector<32x32xf32>
    %cst_16 = arith.constant dense<0.000000e+00> : vector<8x32xf32>
    %15 = tpu.matmul %3, %14, %cst_16 {dimension_numbers = #tpu.dot_dimension_numbers<[1], [0], [0], [1], [0, 0, 1, 1], [], []>} : vector<8x32xf32>, vector<32x32xf32>, vector<8x32xf32> -> vector<8x32xf32>
    %c0_17 = arith.constant 0 : index
    %c0_18 = arith.constant 0 : index
    %16 = vector.load %arg7[%c0_17, %c0_18] : memref<32x32xf32, #tpu.memory_space<vmem>>, vector<32x32xf32>
    %cst_19 = arith.constant dense<0.000000e+00> : vector<8x32xf32>
    %17 = tpu.matmul %5, %16, %cst_19 {dimension_numbers = #tpu.dot_dimension_numbers<[1], [0], [0], [1], [0, 0, 1, 1], [], []>} : vector<8x32xf32>, vector<32x32xf32>, vector<8x32xf32> -> vector<8x32xf32>
    %18 = vector.extract_strided_slice %13 {offsets = [0, 0], sizes = [8, 8], strides = [1, 1]} : vector<8x32xf32> to vector<8x8xf32>
    %19 = vector.extract_strided_slice %15 {offsets = [0, 0], sizes = [8, 8], strides = [1, 1]} : vector<8x32xf32> to vector<8x8xf32>
    %20 = vector.extract_strided_slice %17 {offsets = [0, 0], sizes = [8, 8], strides = [1, 1]} : vector<8x32xf32> to vector<8x8xf32>
    %cst_20 = arith.constant dense<0.000000e+00> : vector<8x8xf32>
    %21 = tpu.matmul %18, %19, %cst_20 {dimension_numbers = #tpu.dot_dimension_numbers<[1], [1], [0], [0], [0, 0, 1, 0], [], []>} : vector<8x8xf32>, vector<8x8xf32>, vector<8x8xf32> -> vector<8x8xf32>
    %cst_21 = arith.constant -1.000000e+20 : f32
    %22 = vector.broadcast %cst_21 : f32 to vector<8x8xf32>
    %23 = arith.select %9, %22, %21 : vector<8x8xi1>, vector<8x8xf32>
    %cst_22 = arith.constant dense<0xFF800000> : vector<8xf32>
    %24 = vector.multi_reduction <maximumf>, %23, %cst_22 [1] : vector<8x8xf32> to vector<8xf32>
    %25 = vector.shape_cast %24 : vector<8xf32> to vector<8x1xf32>
    %26 = vector.broadcast %25 : vector<8x1xf32> to vector<8x8xf32>
    %27 = arith.subf %23, %26 : vector<8x8xf32>
    %28 = math.exp %27 : vector<8x8xf32>
    %cst_23 = arith.constant dense<0.000000e+00> : vector<8xf32>
    %29 = vector.multi_reduction <add>, %28, %cst_23 [1] : vector<8x8xf32> to vector<8xf32>
    %30 = vector.shape_cast %29 : vector<8xf32> to vector<8x1xf32>
    %31 = tpu.reciprocal %30 {approx = true} : vector<8x1xf32> -> vector<8x1xf32>
    %32 = vector.broadcast %31 : vector<8x1xf32> to vector<8x8xf32>
    %33 = arith.mulf %28, %32 : vector<8x8xf32>
    %cst_24 = arith.constant dense<0.000000e+00> : vector<8x8xf32>
    %34 = tpu.matmul %33, %20, %cst_24 {dimension_numbers = #tpu.dot_dimension_numbers<[1], [0], [0], [1], [0, 0, 1, 1], [], []>} : vector<8x8xf32>, vector<8x8xf32>, vector<8x8xf32> -> vector<8x8xf32>
    %35 = vector.extract_strided_slice %13 {offsets = [0, 8], sizes = [8, 8], strides = [1, 1]} : vector<8x32xf32> to vector<8x8xf32>
    %36 = vector.extract_strided_slice %15 {offsets = [0, 8], sizes = [8, 8], strides = [1, 1]} : vector<8x32xf32> to vector<8x8xf32>
    %37 = vector.extract_strided_slice %17 {offsets = [0, 8], sizes = [8, 8], strides = [1, 1]} : vector<8x32xf32> to vector<8x8xf32>
    %cst_25 = arith.constant dense<0.000000e+00> : vector<8x8xf32>
    %38 = tpu.matmul %35, %36, %cst_25 {dimension_numbers = #tpu.dot_dimension_numbers<[1], [1], [0], [0], [0, 0, 1, 0], [], []>} : vector<8x8xf32>, vector<8x8xf32>, vector<8x8xf32> -> vector<8x8xf32>
    %cst_26 = arith.constant -1.000000e+20 : f32
    %39 = vector.broadcast %cst_26 : f32 to vector<8x8xf32>
    %40 = arith.select %9, %39, %38 : vector<8x8xi1>, vector<8x8xf32>
    %cst_27 = arith.constant dense<0xFF800000> : vector<8xf32>
    %41 = vector.multi_reduction <maximumf>, %40, %cst_27 [1] : vector<8x8xf32> to vector<8xf32>
    %42 = vector.shape_cast %41 : vector<8xf32> to vector<8x1xf32>
    %43 = vector.broadcast %42 : vector<8x1xf32> to vector<8x8xf32>
    %44 = arith.subf %40, %43 : vector<8x8xf32>
    %45 = math.exp %44 : vector<8x8xf32>
    %cst_28 = arith.constant dense<0.000000e+00> : vector<8xf32>
    %46 = vector.multi_reduction <add>, %45, %cst_28 [1] : vector<8x8xf32> to vector<8xf32>
    %47 = vector.shape_cast %46 : vector<8xf32> to vector<8x1xf32>
    %48 = tpu.reciprocal %47 {approx = true} : vector<8x1xf32> -> vector<8x1xf32>
    %49 = vector.broadcast %48 : vector<8x1xf32> to vector<8x8xf32>
    %50 = arith.mulf %45, %49 : vector<8x8xf32>
    %cst_29 = arith.constant dense<0.000000e+00> : vector<8x8xf32>
    %51 = tpu.matmul %50, %37, %cst_29 {dimension_numbers = #tpu.dot_dimension_numbers<[1], [0], [0], [1], [0, 0, 1, 1], [], []>} : vector<8x8xf32>, vector<8x8xf32>, vector<8x8xf32> -> vector<8x8xf32>
    %52 = vector.extract_strided_slice %13 {offsets = [0, 16], sizes = [8, 8], strides = [1, 1]} : vector<8x32xf32> to vector<8x8xf32>
    %53 = vector.extract_strided_slice %15 {offsets = [0, 16], sizes = [8, 8], strides = [1, 1]} : vector<8x32xf32> to vector<8x8xf32>
    %54 = vector.extract_strided_slice %17 {offsets = [0, 16], sizes = [8, 8], strides = [1, 1]} : vector<8x32xf32> to vector<8x8xf32>
    %cst_30 = arith.constant dense<0.000000e+00> : vector<8x8xf32>
    %55 = tpu.matmul %52, %53, %cst_30 {dimension_numbers = #tpu.dot_dimension_numbers<[1], [1], [0], [0], [0, 0, 1, 0], [], []>} : vector<8x8xf32>, vector<8x8xf32>, vector<8x8xf32> -> vector<8x8xf32>
    %cst_31 = arith.constant -1.000000e+20 : f32
    %56 = vector.broadcast %cst_31 : f32 to vector<8x8xf32>
    %57 = arith.select %9, %56, %55 : vector<8x8xi1>, vector<8x8xf32>
    %cst_32 = arith.constant dense<0xFF800000> : vector<8xf32>
    %58 = vector.multi_reduction <maximumf>, %57, %cst_32 [1] : vector<8x8xf32> to vector<8xf32>
    %59 = vector.shape_cast %58 : vector<8xf32> to vector<8x1xf32>
    %60 = vector.broadcast %59 : vector<8x1xf32> to vector<8x8xf32>
    %61 = arith.subf %57, %60 : vector<8x8xf32>
    %62 = math.exp %61 : vector<8x8xf32>
    %cst_33 = arith.constant dense<0.000000e+00> : vector<8xf32>
    %63 = vector.multi_reduction <add>, %62, %cst_33 [1] : vector<8x8xf32> to vector<8xf32>
    %64 = vector.shape_cast %63 : vector<8xf32> to vector<8x1xf32>
    %65 = tpu.reciprocal %64 {approx = true} : vector<8x1xf32> -> vector<8x1xf32>
    %66 = vector.broadcast %65 : vector<8x1xf32> to vector<8x8xf32>
    %67 = arith.mulf %62, %66 : vector<8x8xf32>
    %cst_34 = arith.constant dense<0.000000e+00> : vector<8x8xf32>
    %68 = tpu.matmul %67, %54, %cst_34 {dimension_numbers = #tpu.dot_dimension_numbers<[1], [0], [0], [1], [0, 0, 1, 1], [], []>} : vector<8x8xf32>, vector<8x8xf32>, vector<8x8xf32> -> vector<8x8xf32>
    %69 = vector.extract_strided_slice %13 {offsets = [0, 24], sizes = [8, 8], strides = [1, 1]} : vector<8x32xf32> to vector<8x8xf32>
    %70 = vector.extract_strided_slice %15 {offsets = [0, 24], sizes = [8, 8], strides = [1, 1]} : vector<8x32xf32> to vector<8x8xf32>
    %71 = vector.extract_strided_slice %17 {offsets = [0, 24], sizes = [8, 8], strides = [1, 1]} : vector<8x32xf32> to vector<8x8xf32>
    %cst_35 = arith.constant dense<0.000000e+00> : vector<8x8xf32>
    %72 = tpu.matmul %69, %70, %cst_35 {dimension_numbers = #tpu.dot_dimension_numbers<[1], [1], [0], [0], [0, 0, 1, 0], [], []>} : vector<8x8xf32>, vector<8x8xf32>, vector<8x8xf32> -> vector<8x8xf32>
    %cst_36 = arith.constant -1.000000e+20 : f32
    %73 = vector.broadcast %cst_36 : f32 to vector<8x8xf32>
    %74 = arith.select %9, %73, %72 : vector<8x8xi1>, vector<8x8xf32>
    %cst_37 = arith.constant dense<0xFF800000> : vector<8xf32>
    %75 = vector.multi_reduction <maximumf>, %74, %cst_37 [1] : vector<8x8xf32> to vector<8xf32>
    %76 = vector.shape_cast %75 : vector<8xf32> to vector<8x1xf32>
    %77 = vector.broadcast %76 : vector<8x1xf32> to vector<8x8xf32>
    %78 = arith.subf %74, %77 : vector<8x8xf32>
    %79 = math.exp %78 : vector<8x8xf32>
    %cst_38 = arith.constant dense<0.000000e+00> : vector<8xf32>
    %80 = vector.multi_reduction <add>, %79, %cst_38 [1] : vector<8x8xf32> to vector<8xf32>
    %81 = vector.shape_cast %80 : vector<8xf32> to vector<8x1xf32>
    %82 = tpu.reciprocal %81 {approx = true} : vector<8x1xf32> -> vector<8x1xf32>
    %83 = vector.broadcast %82 : vector<8x1xf32> to vector<8x8xf32>
    %84 = arith.mulf %79, %83 : vector<8x8xf32>
    %cst_39 = arith.constant dense<0.000000e+00> : vector<8x8xf32>
    %85 = tpu.matmul %84, %71, %cst_39 {dimension_numbers = #tpu.dot_dimension_numbers<[1], [0], [0], [1], [0, 0, 1, 1], [], []>} : vector<8x8xf32>, vector<8x8xf32>, vector<8x8xf32> -> vector<8x8xf32>
    %86 = tpu.concatenate %34, %51, %68, %85 in 1 : vector<8x8xf32>, vector<8x8xf32>, vector<8x8xf32>, vector<8x8xf32> -> vector<8x32xf32>
    %c0_40 = arith.constant 0 : index
    %c0_41 = arith.constant 0 : index
    %87 = vector.load %arg8[%c0_40, %c0_41] : memref<32x32xf32, #tpu.memory_space<vmem>>, vector<32x32xf32>
    %cst_42 = arith.constant dense<0.000000e+00> : vector<8x32xf32>
    %88 = tpu.matmul %86, %87, %cst_42 {dimension_numbers = #tpu.dot_dimension_numbers<[1], [0], [0], [1], [0, 0, 1, 1], [], []>} : vector<8x32xf32>, vector<32x32xf32>, vector<8x32xf32> -> vector<8x32xf32>
    %c0_43 = arith.constant 0 : index
    %c0_44 = arith.constant 0 : index
    %89 = vector.load %arg9[%c0_43, %c0_44] : memref<1x32xf32, #tpu.memory_space<vmem>>, vector<1x32xf32>
    %90 = vector.broadcast %89 : vector<1x32xf32> to vector<8x32xf32>
    %91 = arith.addf %88, %90 : vector<8x32xf32>
    %c0_45 = arith.constant 0 : index
    %c0_46 = arith.constant 0 : index
    %c0_47 = arith.constant 0 : index
    %92 = vector.load %arg10[%c0_45, %c0_46, %c0_47] : memref<1x8x32xf32, #tpu.memory_space<vmem>>, vector<1x8x32xf32>
    %93 = vector.shape_cast %92 : vector<1x8x32xf32> to vector<8x32xf32>
    %94 = vector.shape_cast %91 : vector<8x32xf32> to vector<1x8x32xf32>
    tpu.vector_store %arg10[%c0_45, %c0_46, %c0_47], %94 {strides = array<i32>} : memref<1x8x32xf32, #tpu.memory_space<vmem>>, vector<1x8x32xf32>,
    return
  }
  func.func @transform_0(%arg0: i32) -> (i32, i32, i32) {
    %c0_i32 = arith.constant 0 : i32
    %c0_i32_0 = arith.constant 0 : i32
    %c0_i32_1 = arith.constant 0 : i32
    return %arg0, %c0_i32, %c0_i32_0 : i32, i32, i32
  }
  func.func @transform_1(%arg0: i32) -> (i32, i32, i32) {
    %c0_i32 = arith.constant 0 : i32
    %c0_i32_0 = arith.constant 0 : i32
    %c0_i32_1 = arith.constant 0 : i32
    return %arg0, %c0_i32, %c0_i32_0 : i32, i32, i32
  }
  func.func @transform_2(%arg0: i32) -> (i32, i32, i32) {
    %c0_i32 = arith.constant 0 : i32
    %c0_i32_0 = arith.constant 0 : i32
    %c0_i32_1 = arith.constant 0 : i32
    return %arg0, %c0_i32, %c0_i32_0 : i32, i32, i32
  }
  func.func @transform_3(%arg0: i32) -> (i32, i32, i32) {
    %c0_i32 = arith.constant 0 : i32
    %c0_i32_0 = arith.constant 0 : i32
    %c0_i32_1 = arith.constant 0 : i32
    return %arg0, %c0_i32, %c0_i32_0 : i32, i32, i32
  }
  func.func @transform_4(%arg0: i32) -> (i32, i32) {
    %c0_i32 = arith.constant 0 : i32
    %c0_i32_0 = arith.constant 0 : i32
    %c0_i32_1 = arith.constant 0 : i32
    return %c0_i32, %c0_i32_0 : i32, i32
  }
  func.func @transform_5(%arg0: i32) -> (i32, i32) {
    %c0_i32 = arith.constant 0 : i32
    %c0_i32_0 = arith.constant 0 : i32
    %c0_i32_1 = arith.constant 0 : i32
    return %c0_i32, %c0_i32_0 : i32, i32
  }
  func.func @transform_6(%arg0: i32) -> (i32, i32) {
    %c0_i32 = arith.constant 0 : i32
    %c0_i32_0 = arith.constant 0 : i32
    %c0_i32_1 = arith.constant 0 : i32
    return %c0_i32, %c0_i32_0 : i32, i32
  }
  func.func @transform_7(%arg0: i32) -> (i32, i32) {
    %c0_i32 = arith.constant 0 : i32
    %c0_i32_0 = arith.constant 0 : i32
    %c0_i32_1 = arith.constant 0 : i32
    return %c0_i32, %c0_i32_0 : i32, i32
  }
  func.func @transform_8(%arg0: i32) -> (i32, i32) {
    %c0_i32 = arith.constant 0 : i32
    %c0_i32_0 = arith.constant 0 : i32
    %c0_i32_1 = arith.constant 0 : i32
    return %c0_i32, %c0_i32_0 : i32, i32
  }
  func.func @transform_9(%arg0: i32) -> (i32, i32, i32) {
    %c0_i32 = arith.constant 0 : i32
    %c0_i32_0 = arith.constant 0 : i32
    %c0_i32_1 = arith.constant 0 : i32
    return %arg0, %c0_i32, %c0_i32_0 : i32, i32, i32
  }
}

</mosaic_0001>

<llo_original>
// kernel: tpu_custom_call.1
$region0: #{tpu_custom_call.1}
  #allocation0 [shape = 'u32[]', space=smem, size = 0x4, offset = 0x4, fixed_abs, tag = 'smem constant byte address 0x4 - core index']
  #allocation1 [shape = 'u32[144,128]{1,0:T(1,128)}', space=vmem, size = 0x12000, scoped, tag = 'internal scratch']
  %s0 = inlined_call_operand.hbm [shape: f32[2,8,32], index: 0, kind: input, shape index: {}]
  %s1 = inlined_call_operand.hbm [shape: f32[2,8,32], index: 1, kind: input, shape index: {}]
  %s2 = inlined_call_operand.hbm [shape: f32[2,8,32], index: 2, kind: input, shape index: {}]
  %s3 = inlined_call_operand.hbm [shape: s32[2,8,8], index: 3, kind: input, shape index: {}]
  %s4 = inlined_call_operand.hbm [shape: f32[32,32], index: 4, kind: input, shape index: {}]
  %s5 = inlined_call_operand.hbm [shape: f32[32,32], index: 5, kind: input, shape index: {}]
  %s6 = inlined_call_operand.hbm [shape: f32[32,32], index: 6, kind: input, shape index: {}]
  %s7 = inlined_call_operand.hbm [shape: f32[32,32], index: 7, kind: input, shape index: {}]
  %s8 = inlined_call_operand.vmem [shape: f32[1,32], index: 8, kind: input, shape index: {}]
  %s9 = inlined_call_operand.hbm [shape: f32[2,8,32], index: 9, kind: output, shape index: {}]
  %s10 = sld [smem:[#allocation0]]
  $region101: #{tpu_custom_call.1} parent=0
    _
  %s12 = ssub.s32 1, %s10
  %s13 = scalar_select 0, %s12, %s10
  $region1: #{tpu_custom_call.1} parent=0
    #allocation2 [shape = 'u8[8192]{0}', space=vmem, size = 0x2000, scoped, tag = 'input window, operand 0']
    #allocation3 [shape = 's32[2]{0}', space=sflag, size = 0x8, scoped, tag = 'scoped memory for tpu_custom_call.1']
    #allocation4 [shape = 's32[2]{0}', space=sflag, size = 0x8, scoped, tag = 'scoped memory for tpu_custom_call.1']
    #allocation5 [shape = 'u8[8192]{0}', space=vmem, size = 0x2000, scoped, tag = 'input window, operand 1']
    #allocation6 [shape = 's32[2]{0}', space=sflag, size = 0x8, scoped, tag = 'scoped memory for tpu_custom_call.1']
    #allocation7 [shape = 'u8[8192]{0}', space=vmem, size = 0x2000, scoped, tag = 'input window, operand 2']
    #allocation8 [shape = 'u8[8192]{0}', space=vmem, size = 0x2000, scoped, tag = 'input window, operand 3']
    #allocation9 [shape = 's32[2]{0}', space=sflag, size = 0x8, scoped, tag = 'scoped memory for tpu_custom_call.1']
    #allocation10 [shape = 'u8[16384]{0}', space=vmem, size = 0x4000, scoped, tag = 'input window, operand 4, single buffered']
    #allocation11 [shape = 'u8[16384]{0}', space=vmem, size = 0x4000, scoped, tag = 'input window, operand 5, single buffered']
    #allocation12 [shape = 's32[1]{0}', space=sflag, size = 0x4, scoped, tag = 'scoped memory for tpu_custom_call.1']
    #allocation13 [shape = 'u8[16384]{0}', space=vmem, size = 0x4000, scoped, tag = 'input window, operand 6, single buffered']
    #allocation14 [shape = 'u8[16384]{0}', space=vmem, size = 0x4000, scoped, tag = 'input window, operand 7, single buffered']
    #allocation15 [shape = 's32[1]{0}', space=sflag, size = 0x4, scoped, tag = 'scoped memory for tpu_custom_call.1']
    #allocation16 [shape = 'u8[8192]{0}', space=vmem, size = 0x2000, scoped, tag = 'output window, operand 0']
    %14 = vsyncpa [#allocation3], 0
    %s15 = scalar_lea.sflag [#allocation3], 1
    %16 = vsyncpa %s15, 0
    %17 = vsyncpa [#allocation6], 0
    %s18 = scalar_lea.sflag [#allocation6], 1
    %19 = vsyncpa %s18, 0
    %20 = vsyncpa [#allocation9], 0
    %s21 = scalar_lea.sflag [#allocation9], 1
    %22 = vsyncpa %s21, 0
    %23 = vsyncpa [#allocation12], 0
    %24 = vsyncpa [#allocation15], 0
    %25 = vsyncpa [#allocation4], 0
    %s26 = scalar_lea.sflag [#allocation4], 1
    %27 = vsyncpa %s26, 0
    loop: start=0, step=1, limit=4
    $region2: #{tpu_custom_call.1} parent=1 // loop_pre_header
      _
    $region3: #{tpu_custom_call.1} parent=1 // loop_header
      %s29 = sphi 0, %s33
      %p30 = scmp.ge.s32.totalorder %s29, 4
      %s39 = sphi 0, %s41
      %s42 = sphi 0, %s39
      %s43 = sphi 0, %s42
      %s59 = sphi 0, %s43
      %s65 = sphi 0, %s67
      %s68 = sphi 0, %s65
      %s69 = sphi 0, %s68
      %s85 = sphi 0, %s69
      %s91 = sphi 0, %s93
      %s94 = sphi 0, %s91
      %s95 = sphi 0, %s94
      %s111 = sphi 0, %s95
      %s117 = sphi 0, %s119
      %s120 = sphi 0, %s117
      %s121 = sphi 0, %s120
      %s137 = sphi 0, %s121
      %s141 = sphi 0, %s141
      %s143 = sphi 0, %s141
      %s144 = sphi 0, %s143
      %s158 = sphi 0, %s144
      %s162 = sphi 0, %s162
      %s164 = sphi 0, %s162
      %s165 = sphi 0, %s164
      %s179 = sphi 0, %s165
      %s183 = sphi 0, %s183
      %s185 = sphi 0, %s183
      %s186 = sphi 0, %s185
      %s200 = sphi 0, %s186
      %s204 = sphi 0, %s204
      %s206 = sphi 0, %s204
      %s207 = sphi 0, %s206
      %s221 = sphi 0, %s207
      %s225 = sphi 0, %s225
      %s227 = sphi 0, %s225
      %s228 = sphi 0, %s227
      %s242 = sphi 0, %s228
      %s248 = sphi 0, %s250
      %s251 = sphi 0, %s248
      %s252 = sphi 0, %s251
      %s268 = sphi 0, %s252
    $region4: #{tpu_custom_call.1} parent=1 // loop_header_branch
      %32 = sbr.rel (%p30) target = $region8
    $region5: #{tpu_custom_call.1} parent=1 // loop_body
      %s34 = ssub.s32 %s29, 1
      %s35 = ssub.s32 %s29, 2
      %s36 = sadd.s32 %s29, 1
      %s37 = ssub.s32 %s29, %s36
      %p38 = scmp.eq.s32.totalorder %s37, 0
      %s40 = sadd.s32 %s39, 1
      %s41 = scalar_select %p38, %s39, %s40
      %p44 = pneg %p38
      %p45 = scmp.eq.s32.totalorder %s29, 1
      %p46 = por %p44, %p45
      %p47 = scmp.ne.s32.totalorder %s39, %s42
      %p48 = scmp.eq.s32.totalorder %s29, 0
      %p49 = por %p47, %p48
      %p50 = scmp.ne.s32.totalorder %s39, %s42
      %p51 = scmp.eq.s32.totalorder %s34, 1
      %p52 = por %p50, %p51
      %p53 = scmp.ne.s32.totalorder %s42, %s43
      %p54 = scmp.eq.s32.totalorder %s34, 0
      %p55 = por %p53, %p54
      %p56 = scmp.ne.s32.totalorder %s42, %s43
      %p57 = scmp.eq.s32.totalorder %s35, 1
      %p58 = por %p56, %p57
      %p60 = scmp.ne.s32.totalorder %s43, %s59
      %p61 = scmp.eq.s32.totalorder %s35, 0
      %p62 = por %p60, %p61
      %s63 = ssub.s32 %s29, %s36
      %p64 = scmp.eq.s32.totalorder %s63, 0
      %s66 = sadd.s32 %s65, 1
      %s67 = scalar_select %p64, %s65, %s66
      %p70 = pneg %p64
      %p71 = scmp.eq.s32.totalorder %s29, 1
      %p72 = por %p70, %p71
      %p73 = scmp.ne.s32.totalorder %s65, %s68
      %p74 = scmp.eq.s32.totalorder %s29, 0
      %p75 = por %p73, %p74
      %p76 = scmp.ne.s32.totalorder %s65, %s68
      %p77 = scmp.eq.s32.totalorder %s34, 1
      %p78 = por %p76, %p77
      %p79 = scmp.ne.s32.totalorder %s68, %s69
      %p80 = scmp.eq.s32.totalorder %s34, 0
      %p81 = por %p79, %p80
      %p82 = scmp.ne.s32.totalorder %s68, %s69
      %p83 = scmp.eq.s32.totalorder %s35, 1
      %p84 = por %p82, %p83
      %p86 = scmp.ne.s32.totalorder %s69, %s85
      %p87 = scmp.eq.s32.totalorder %s35, 0
      %p88 = por %p86, %p87
      %s89 = ssub.s32 %s29, %s36
      %p90 = scmp.eq.s32.totalorder %s89, 0
      %s92 = sadd.s32 %s91, 1
      %s93 = scalar_select %p90, %s91, %s92
      %p96 = pneg %p90
      %p97 = scmp.eq.s32.totalorder %s29, 1
      %p98 = por %p96, %p97
      %p99 = scmp.ne.s32.totalorder %s91, %s94
      %p100 = scmp.eq.s32.totalorder %s29, 0
      %p101 = por %p99, %p100
      %p102 = scmp.ne.s32.totalorder %s91, %s94
      %p103 = scmp.eq.s32.totalorder %s34, 1
      %p104 = por %p102, %p103
      %p105 = scmp.ne.s32.totalorder %s94, %s95
      %p106 = scmp.eq.s32.totalorder %s34, 0
      %p107 = por %p105, %p106
      %p108 = scmp.ne.s32.totalorder %s94, %s95
      %p109 = scmp.eq.s32.totalorder %s35, 1
      %p110 = por %p108, %p109
      %p112 = scmp.ne.s32.totalorder %s95, %s111
      %p113 = scmp.eq.s32.totalorder %s35, 0
      %p114 = por %p112, %p113
      %s115 = ssub.s32 %s29, %s36
      %p116 = scmp.eq.s32.totalorder %s115, 0
      %s118 = sadd.s32 %s117, 1
      %s119 = scalar_select %p116, %s117, %s118
      %p122 = pneg %p116
      %p123 = scmp.eq.s32.totalorder %s29, 1
      %p124 = por %p122, %p123
      %p125 = scmp.ne.s32.totalorder %s117, %s120
      %p126 = scmp.eq.s32.totalorder %s29, 0
      %p127 = por %p125, %p126
      %p128 = scmp.ne.s32.totalorder %s117, %s120
      %p129 = scmp.eq.s32.totalorder %s34, 1
      %p130 = por %p128, %p129
      %p131 = scmp.ne.s32.totalorder %s120, %s121
      %p132 = scmp.eq.s32.totalorder %s34, 0
      %p133 = por %p131, %p132
      %p134 = scmp.ne.s32.totalorder %s120, %s121
      %p135 = scmp.eq.s32.totalorder %s35, 1
      %p136 = por %p134, %p135
      %p138 = scmp.ne.s32.totalorder %s121, %s137
      %p139 = scmp.eq.s32.totalorder %s35, 0
      %p140 = por %p138, %p139
      %s142 = sadd.s32 %s141, 1
      %p145 = scmp.eq.s32.totalorder %s29, 1
      %p146 = scmp.ne.s32.totalorder %s141, %s143
      %p147 = scmp.eq.s32.totalorder %s29, 0
      %p148 = por %p146, %p147
      %p149 = scmp.ne.s32.totalorder %s141, %s143
      %p150 = scmp.eq.s32.totalorder %s34, 1
      %p151 = por %p149, %p150
      %p152 = scmp.ne.s32.totalorder %s143, %s144
      %p153 = scmp.eq.s32.totalorder %s34, 0
      %p154 = por %p152, %p153
      %p155 = scmp.ne.s32.totalorder %s143, %s144
      %p156 = scmp.eq.s32.totalorder %s35, 1
      %p157 = por %p155, %p156
      %p159 = scmp.ne.s32.totalorder %s144, %s158
      %p160 = scmp.eq.s32.totalorder %s35, 0
      %p161 = por %p159, %p160
      %s163 = sadd.s32 %s162, 1
      %p166 = scmp.eq.s32.totalorder %s29, 1
      %p167 = scmp.ne.s32.totalorder %s162, %s164
      %p168 = scmp.eq.s32.totalorder %s29, 0
      %p169 = por %p167, %p168
      %p170 = scmp.ne.s32.totalorder %s162, %s164
      %p171 = scmp.eq.s32.totalorder %s34, 1
      %p172 = por %p170, %p171
      %p173 = scmp.ne.s32.totalorder %s164, %s165
      %p174 = scmp.eq.s32.totalorder %s34, 0
      %p175 = por %p173, %p174
      %p176 = scmp.ne.s32.totalorder %s164, %s165
      %p177 = scmp.eq.s32.totalorder %s35, 1
      %p178 = por %p176, %p177
      %p180 = scmp.ne.s32.totalorder %s165, %s179
      %p181 = scmp.eq.s32.totalorder %s35, 0
      %p182 = por %p180, %p181
      %s184 = sadd.s32 %s183, 1
      %p187 = scmp.eq.s32.totalorder %s29, 1
      %p188 = scmp.ne.s32.totalorder %s183, %s185
      %p189 = scmp.eq.s32.totalorder %s29, 0
      %p190 = por %p188, %p189
      %p191 = scmp.ne.s32.totalorder %s183, %s185
      %p192 = scmp.eq.s32.totalorder %s34, 1
      %p193 = por %p191, %p192
      %p194 = scmp.ne.s32.totalorder %s185, %s186
      %p195 = scmp.eq.s32.totalorder %s34, 0
      %p196 = por %p194, %p195
      %p197 = scmp.ne.s32.totalorder %s185, %s186
      %p198 = scmp.eq.s32.totalorder %s35, 1
      %p199 = por %p197, %p198
      %p201 = scmp.ne.s32.totalorder %s186, %s200
      %p202 = scmp.eq.s32.totalorder %s35, 0
      %p203 = por %p201, %p202
      %s205 = sadd.s32 %s204, 1
      %p208 = scmp.eq.s32.totalorder %s29, 1
      %p209 = scmp.ne.s32.totalorder %s204, %s206
      %p210 = scmp.eq.s32.totalorder %s29, 0
      %p211 = por %p209, %p210
      %p212 = scmp.ne.s32.totalorder %s204, %s206
      %p213 = scmp.eq.s32.totalorder %s34, 1
      %p214 = por %p212, %p213
      %p215 = scmp.ne.s32.totalorder %s206, %s207
      %p216 = scmp.eq.s32.totalorder %s34, 0
      %p217 = por %p215, %p216
      %p218 = scmp.ne.s32.totalorder %s206, %s207
      %p219 = scmp.eq.s32.totalorder %s35, 1
      %p220 = por %p218, %p219
      %p222 = scmp.ne.s32.totalorder %s207, %s221
      %p223 = scmp.eq.s32.totalorder %s35, 0
      %p224 = por %p222, %p223
      %s226 = sadd.s32 %s225, 1
      %p229 = scmp.eq.s32.totalorder %s29, 1
      %p230 = scmp.ne.s32.totalorder %s225, %s227
      %p231 = scmp.eq.s32.totalorder %s29, 0
      %p232 = por %p230, %p231
      %p233 = scmp.ne.s32.totalorder %s225, %s227
      %p234 = scmp.eq.s32.totalorder %s34, 1
      %p235 = por %p233, %p234
      %p236 = scmp.ne.s32.totalorder %s227, %s228
      %p237 = scmp.eq.s32.totalorder %s34, 0
      %p238 = por %p236, %p237
      %p239 = scmp.ne.s32.totalorder %s227, %s228
      %p240 = scmp.eq.s32.totalorder %s35, 1
      %p241 = por %p239, %p240
      %p243 = scmp.ne.s32.totalorder %s228, %s242
      %p244 = scmp.eq.s32.totalorder %s35, 0
      %p245 = por %p243, %p244
      %s246 = ssub.s32 %s29, %s36
      %p247 = scmp.eq.s32.totalorder %s246, 0
      %s249 = sadd.s32 %s248, 1
      %s250 = scalar_select %p247, %s248, %s249
      %p253 = pneg %p247
      %p254 = scmp.eq.s32.totalorder %s29, 1
      %p255 = por %p253, %p254
      %p256 = scmp.ne.s32.totalorder %s248, %s251
      %p257 = scmp.eq.s32.totalorder %s29, 0
      %p258 = por %p256, %p257
      %p259 = scmp.ne.s32.totalorder %s248, %s251
      %p260 = scmp.eq.s32.totalorder %s34, 1
      %p261 = por %p259, %p260
      %p262 = scmp.ne.s32.totalorder %s251, %s252
      %p263 = scmp.eq.s32.totalorder %s34, 0
      %p264 = por %p262, %p263
      %p265 = scmp.ne.s32.totalorder %s251, %s252
      %p266 = scmp.eq.s32.totalorder %s35, 1
      %p267 = por %p265, %p266
      %p269 = scmp.ne.s32.totalorder %s252, %s268
      %p270 = scmp.eq.s32.totalorder %s35, 0
      %p271 = por %p269, %p270
      %p272 = scmp.le.s32.totalorder 1, %s29
      %p273 = scmp.lt.s32.totalorder %s29, 3
      %p274 = pnand %p272, %p273
      %p275 = pneg %p274
      // Predicated region
      $region9: #{tpu_custom_call.1} parent=5 // pred_check
        _
      $region10: #{tpu_custom_call.1} parent=5 // pred_check_branch
        %277 = sbr.rel (%p274) target = $region12
      $region11: #{tpu_custom_call.1} parent=5 // pred_region
        %s278 = ssub.s32 %s29, 1
        // Predicated region
        $region13: #{tpu_custom_call.1} parent=11 // pred_check
          %p279 = pneg %p154
        $region14: #{tpu_custom_call.1} parent=11 // pred_check_branch
          %281 = sbr.rel (%p279) target = $region16
        $region15: #{tpu_custom_call.1} parent=11 // pred_region
          %s283 = ssub.s32 512, 512
          %284 = vsyncadd [#allocation9], %s283
          %s285 = sshll.u32 [#allocation10], 4
          %s286 = int_to_ptr.vmem [resolvable:$true] %s285
          %291 = dma.hbm_to_vmem [thread:$0]  %s4, 512, %s286, [#allocation9], 128, 128, 8
        $region16: #{tpu_custom_call.1} parent=11 // pred_fallthru
          _
        // Predicated region
        $region17: #{tpu_custom_call.1} parent=11 // pred_check
          %p292 = pneg %p175
        $region18: #{tpu_custom_call.1} parent=11 // pred_check_branch
          %294 = sbr.rel (%p292) target = $region20
        $region19: #{tpu_custom_call.1} parent=11 // pred_region
          %s296 = ssub.s32 512, 512
          %297 = vsyncadd [#allocation12], %s296
          %s298 = sshll.u32 [#allocation11], 4
          %s299 = int_to_ptr.vmem [resolvable:$true] %s298
          %304 = dma.hbm_to_vmem [thread:$0]  %s5, 512, %s299, [#allocation12], 128, 128, 8
        $region20: #{tpu_custom_call.1} parent=11 // pred_fallthru
          _
        // Predicated region
        $region21: #{tpu_custom_call.1} parent=11 // pred_check
          %p305 = pneg %p196
        $region22: #{tpu_custom_call.1} parent=11 // pred_check_branch
          %307 = sbr.rel (%p305) target = $region24
        $region23: #{tpu_custom_call.1} parent=11 // pred_region
          %s309 = ssub.s32 512, 512
          %310 = vsyncadd [#allocation12], %s309
          %s311 = sshll.u32 [#allocation13], 4
          %s312 = int_to_ptr.vmem [resolvable:$true] %s311
          %317 = dma.hbm_to_vmem [thread:$0]  %s6, 512, %s312, [#allocation12], 128, 128, 8
        $region24: #{tpu_custom_call.1} parent=11 // pred_fallthru
          _
        // Predicated region
        $region25: #{tpu_custom_call.1} parent=11 // pred_check
          %p318 = pneg %p217
        $region26: #{tpu_custom_call.1} parent=11 // pred_check_branch
          %320 = sbr.rel (%p318) target = $region28
        $region27: #{tpu_custom_call.1} parent=11 // pred_region
          %s322 = ssub.s32 512, 512
          %323 = vsyncadd [#allocation15], %s322
          %s324 = sshll.u32 [#allocation14], 4
          %s325 = int_to_ptr.vmem [resolvable:$true] %s324
          %330 = dma.hbm_to_vmem [thread:$0]  %s7, 512, %s325, [#allocation15], 128, 128, 8
        $region28: #{tpu_custom_call.1} parent=11 // pred_fallthru
          _
        // Predicated region
        $region29: #{tpu_custom_call.1} parent=11 // pred_check
          %p331 = pneg %p238
        $region30: #{tpu_custom_call.1} parent=11 // pred_check_branch
          %333 = sbr.rel (%p331) target = $region32
        $region31: #{tpu_custom_call.1} parent=11 // pred_region
          _
        $region32: #{tpu_custom_call.1} parent=11 // pred_fallthru
          _
      $region12: #{tpu_custom_call.1} parent=5 // pred_fallthru
        _
      %p334 = scmp.lt.s32.totalorder %s29, 2
      // Predicated region
      $region33: #{tpu_custom_call.1} parent=5 // pred_check
        %p335 = pneg %p334
      $region34: #{tpu_custom_call.1} parent=5 // pred_check_branch
        %337 = sbr.rel (%p335) target = $region36
      $region35: #{tpu_custom_call.1} parent=5 // pred_region
        // Predicated region
        $region37: #{tpu_custom_call.1} parent=35 // pred_check
          %p338 = pneg %p49
        $region38: #{tpu_custom_call.1} parent=35 // pred_check_branch
          %340 = sbr.rel (%p338) target = $region40
        $region39: #{tpu_custom_call.1} parent=35 // pred_region
          %s341 = sand.u32 %s39, 1
          %s342 = scalar_lea.sflag [#allocation3], %s341
          %s343 = sand.u32 %s39, 1
          %s344 = smul.addr %s343, 8
          %s345 = scalar_lea.vmem [#allocation2], %s344
          %s347 = ssub.s32 128, 128
          %348 = vsyncadd %s342, %s347
          %s349 = smul.addr %s29, 128
          %s350 = scalar_lea.hbm %s0, %s349
          %s352 = sshll.u32 %s345, 4
          %s353 = int_to_ptr.vmem [resolvable:$true] %s352
          %355 = dma.hbm_to_vmem [thread:$0]  %s350, 128, %s353, %s342
        $region40: #{tpu_custom_call.1} parent=35 // pred_fallthru
          _
        // Predicated region
        $region41: #{tpu_custom_call.1} parent=35 // pred_check
          %p356 = pneg %p75
        $region42: #{tpu_custom_call.1} parent=35 // pred_check_branch
          %358 = sbr.rel (%p356) target = $region44
        $region43: #{tpu_custom_call.1} parent=35 // pred_region
          %s359 = sand.u32 %s29, 1
          %s360 = scalar_lea.sflag [#allocation6], %s359
          %s361 = sand.u32 %s65, 1
          %s362 = smul.addr %s361, 8
          %s363 = scalar_lea.vmem [#allocation5], %s362
          %s365 = ssub.s32 128, 128
          %366 = vsyncadd %s360, %s365
          %s367 = smul.addr %s29, 128
          %s368 = scalar_lea.hbm %s1, %s367
          %s370 = sshll.u32 %s363, 4
          %s371 = int_to_ptr.vmem [resolvable:$true] %s370
          %373 = dma.hbm_to_vmem [thread:$0]  %s368, 128, %s371, %s360
        $region44: #{tpu_custom_call.1} parent=35 // pred_fallthru
          _
        // Predicated region
        $region45: #{tpu_custom_call.1} parent=35 // pred_check
          %p374 = pneg %p101
        $region46: #{tpu_custom_call.1} parent=35 // pred_check_branch
          %376 = sbr.rel (%p374) target = $region48
        $region47: #{tpu_custom_call.1} parent=35 // pred_region
          %s377 = sand.u32 %s29, 1
          %s378 = scalar_lea.sflag [#allocation6], %s377
          %s379 = sand.u32 %s91, 1
          %s380 = smul.addr %s379, 8
          %s381 = scalar_lea.vmem [#allocation7], %s380
          %s383 = ssub.s32 128, 128
          %384 = vsyncadd %s378, %s383
          %s385 = smul.addr %s29, 128
          %s386 = scalar_lea.hbm %s2, %s385
          %s388 = sshll.u32 %s381, 4
          %s389 = int_to_ptr.vmem [resolvable:$true] %s388
          %391 = dma.hbm_to_vmem [thread:$0]  %s386, 128, %s389, %s378
        $region48: #{tpu_custom_call.1} parent=35 // pred_fallthru
          _
        // Predicated region
        $region49: #{tpu_custom_call.1} parent=35 // pred_check
          %p392 = pneg %p127
        $region50: #{tpu_custom_call.1} parent=35 // pred_check_branch
          %394 = sbr.rel (%p392) target = $region52
        $region51: #{tpu_custom_call.1} parent=35 // pred_region
          %s395 = sand.u32 %s29, 1
          %s396 = scalar_lea.sflag [#allocation9], %s395
          %s397 = sand.u32 %s117, 1
          %s398 = smul.addr %s397, 8
          %s399 = scalar_lea.vmem [#allocation8], %s398
          %s401 = ssub.s32 128, 128
          %402 = vsyncadd %s396, %s401
          %s403 = smul.addr %s29, 128
          %s404 = scalar_lea.hbm %s3, %s403
          %s406 = sshll.u32 %s399, 4
          %s407 = int_to_ptr.vmem [resolvable:$true] %s406
          %409 = dma.hbm_to_vmem [thread:$0]  %s404, 128, %s407, %s396
        $region52: #{tpu_custom_call.1} parent=35 // pred_fallthru
          _
      $region36: #{tpu_custom_call.1} parent=5 // pred_fallthru
        _
      %p410 = scmp.le.s32.totalorder 1, %s29
      %p411 = scmp.lt.s32.totalorder %s29, 3
      %p412 = pnand %p410, %p411
      %p413 = pneg %p412
      // Predicated region
      $region53: #{tpu_custom_call.1} parent=5 // pred_check
        _
      $region54: #{tpu_custom_call.1} parent=5 // pred_check_branch
        %415 = sbr.rel (%p412) target = $region56
      $region55: #{tpu_custom_call.1} parent=5 // pred_region
        %s416 = ssub.s32 %s29, 1
        %s417 = sand.u32 %s42, 1
        %s418 = scalar_lea.sflag [#allocation3], %s417
        %s419 = sand.u32 %s42, 1
        %s420 = smul.addr %s419, 8
        %s421 = scalar_lea.vmem [#allocation2], %s420
        // Predicated region
        $region57: #{tpu_custom_call.1} parent=55 // pred_check
          %p422 = pneg %p55
        $region58: #{tpu_custom_call.1} parent=55 // pred_check_branch
          %424 = sbr.rel (%p422) target = $region60
        $region59: #{tpu_custom_call.1} parent=55 // pred_region
          %425 = dma.done %s418, 128
        $region60: #{tpu_custom_call.1} parent=55 // pred_fallthru
          _
        %s426 = sand.u32 %s34, 1
        %s427 = scalar_lea.sflag [#allocation6], %s426
        %s428 = sand.u32 %s68, 1
        %s429 = smul.addr %s428, 8
        %s430 = scalar_lea.vmem [#allocation5], %s429
        // Predicated region
        $region61: #{tpu_custom_call.1} parent=55 // pred_check
          %p431 = pneg %p81
        $region62: #{tpu_custom_call.1} parent=55 // pred_check_branch
          %433 = sbr.rel (%p431) target = $region64
        $region63: #{tpu_custom_call.1} parent=55 // pred_region
          %434 = dma.done %s427, 128
        $region64: #{tpu_custom_call.1} parent=55 // pred_fallthru
          _
        %s435 = sand.u32 %s34, 1
        %s436 = scalar_lea.sflag [#allocation6], %s435
        %s437 = sand.u32 %s94, 1
        %s438 = smul.addr %s437, 8
        %s439 = scalar_lea.vmem [#allocation7], %s438
        // Predicated region
        $region65: #{tpu_custom_call.1} parent=55 // pred_check
          %p440 = pneg %p107
        $region66: #{tpu_custom_call.1} parent=55 // pred_check_branch
          %442 = sbr.rel (%p440) target = $region68
        $region67: #{tpu_custom_call.1} parent=55 // pred_region
          %443 = dma.done %s436, 128
        $region68: #{tpu_custom_call.1} parent=55 // pred_fallthru
          _
        %s444 = sand.u32 %s34, 1
        %s445 = scalar_lea.sflag [#allocation9], %s444
        %s446 = sand.u32 %s120, 1
        %s447 = smul.addr %s446, 8
        %s448 = scalar_lea.vmem [#allocation8], %s447
        // Predicated region
        $region69: #{tpu_custom_call.1} parent=55 // pred_check
          %p449 = pneg %p133
        $region70: #{tpu_custom_call.1} parent=55 // pred_check_branch
          %451 = sbr.rel (%p449) target = $region72
        $region71: #{tpu_custom_call.1} parent=55 // pred_region
          %452 = dma.done %s445, 128
        $region72: #{tpu_custom_call.1} parent=55 // pred_fallthru
          _
        // Predicated region
        $region73: #{tpu_custom_call.1} parent=55 // pred_check
          %p453 = pneg %p154
        $region74: #{tpu_custom_call.1} parent=55 // pred_check_branch
          %455 = sbr.rel (%p453) target = $region76
        $region75: #{tpu_custom_call.1} parent=55 // pred_region
          %456 = dma.done [#allocation9], 512
        $region76: #{tpu_custom_call.1} parent=55 // pred_fallthru
          _
        // Predicated region
        $region77: #{tpu_custom_call.1} parent=55 // pred_check
          %p457 = pneg %p175
        $region78: #{tpu_custom_call.1} parent=55 // pred_check_branch
          %459 = sbr.rel (%p457) target = $region80
        $region79: #{tpu_custom_call.1} parent=55 // pred_region
          %460 = dma.done [#allocation12], 512
        $region80: #{tpu_custom_call.1} parent=55 // pred_fallthru
          _
        // Predicated region
        $region81: #{tpu_custom_call.1} parent=55 // pred_check
          %p461 = pneg %p196
        $region82: #{tpu_custom_call.1} parent=55 // pred_check_branch
          %463 = sbr.rel (%p461) target = $region84
        $region83: #{tpu_custom_call.1} parent=55 // pred_region
          %464 = dma.done [#allocation12], 512
        $region84: #{tpu_custom_call.1} parent=55 // pred_fallthru
          _
        // Predicated region
        $region85: #{tpu_custom_call.1} parent=55 // pred_check
          %p465 = pneg %p217
        $region86: #{tpu_custom_call.1} parent=55 // pred_check_branch
          %467 = sbr.rel (%p465) target = $region88
        $region87: #{tpu_custom_call.1} parent=55 // pred_region
          %468 = dma.done [#allocation15], 512
        $region88: #{tpu_custom_call.1} parent=55 // pred_fallthru
          _
        %s469 = sand.u32 %s42, 1
        %s470 = scalar_lea.sflag [#allocation3], %s469
        %s471 = sand.u32 %s42, 1
        %s472 = smul.addr %s471, 8
        %s473 = scalar_lea.vmem [#allocation2], %s472
        %p474 = pneg %p55
        %p475 = pneg %p52
        %s476 = sand.u32 %s34, 1
        %s477 = scalar_lea.sflag [#allocation6], %s476
        %s478 = sand.u32 %s68, 1
        %s479 = smul.addr %s478, 8
        %s480 = scalar_lea.vmem [#allocation5], %s479
        %p481 = pneg %p81
        %p482 = pneg %p78
        %s483 = sand.u32 %s34, 1
        %s484 = scalar_lea.sflag [#allocation6], %s483
        %s485 = sand.u32 %s94, 1
        %s486 = smul.addr %s485, 8
        %s487 = scalar_lea.vmem [#allocation7], %s486
        %p488 = pneg %p107
        %p489 = pneg %p104
        %s490 = sand.u32 %s34, 1
        %s491 = scalar_lea.sflag [#allocation9], %s490
        %s492 = sand.u32 %s120, 1
        %s493 = smul.addr %s492, 8
        %s494 = scalar_lea.vmem [#allocation8], %s493
        %p495 = pneg %p133
        %p496 = pneg %p130
        %p497 = pneg %p154
        %p498 = pneg %p151
        %p499 = pneg %p175
        %p500 = pneg %p172
        %p501 = pneg %p196
        %p502 = pneg %p193
        %p503 = pneg %p217
        %p504 = pneg %p214
        %p505 = pneg %p238
        %p506 = pneg %p235
        %p507 = pneg %p264
        %p508 = pneg %p261
        %s509 = sand.u32 %s251, 1
        %s510 = scalar_lea.sflag [#allocation4], %s509
        %s511 = sand.u32 %s251, 1
        %s512 = smul.addr %s511, 8
        %s513 = scalar_lea.vmem [#allocation16], %s512
        %v514 = vld [vmem:[%s421] sm:$0xff]
        %v515 = vld [vmem:[%s430] sm:$0xff]
        %v516 = vld [vmem:[%s439] sm:$0xff]
        %v517 = vld [vmem:[%s448] sm:$0xff]
        %vm518 = vcmp.eq.s32.totalorder %v517, 0
        %v519 = vld [vmem:[#allocation10] sm:$0xff]
        %v520 = vld [vmem:[#allocation10 + $0x8] sm:$0xff]
        %v521 = vld [vmem:[#allocation10 + $0x10] sm:$0xff]
        %v522 = vld [vmem:[#allocation10 + $0x18] sm:$0xff]
        %vm523 = vcmask 261120
        %v525 = vsel %vm523, %v514, 0
        %527 = vmatprep.subr.mxu0 0.0
        %528 = vmatpush1.msra.mxu0 %v519
        %529 = vmatprep.subr.mxu0 0.0
        %530 = vmatpush1.msra.mxu0 %v520
        %531 = vmatprep.subr.mxu0 0.0
        %532 = vmatpush1.msra.mxu0 %v521
        %533 = vmatprep.subr.mxu0 0.0
        %534 = vmatpush1.msra.mxu0 %v522
        %535 = vmatprep.subr.mxu0 0.0
        %536 = vmatpush1.msra.mxu0 0.0
        %537 = vmatprep.subr.mxu0 0.0
        %538 = vmatpush1.msra.mxu0 0.0
        %539 = vmatprep.subr.mxu0 0.0
        %540 = vmatpush1.msra.mxu0 0.0
        %541 = vmatprep.subr.mxu0 0.0
        %542 = vmatpush1.msra.mxu0 0.0
        %543 = vmatprep.subr.mxu0 0.0
        %544 = vmatpush1.msra.mxu0 0.0
        %545 = vmatprep.subr.mxu0 0.0
        %546 = vmatpush1.msra.mxu0 0.0
        %547 = vmatprep.subr.mxu0 0.0
        %548 = vmatpush1.msra.mxu0 0.0
        %549 = vmatprep.subr.mxu0 0.0
        %550 = vmatpush1.msra.mxu0 0.0
        %551 = vmatprep.subr.mxu0 0.0
        %552 = vmatpush1.msra.mxu0 0.0
        %553 = vmatprep.subr.mxu0 0.0
        %554 = vmatpush1.msra.mxu0 0.0
        %555 = vmatprep.subr.mxu0 0.0
        %556 = vmatpush1.msra.mxu0 0.0
        %557 = vmatprep.subr.mxu0 0.0
        %558 = vmatpush1.msra.mxu0 0.0
        %559 = vmatprep.subr.mxu0 0.0
        %560 = vmatpush1.msra.mxu0 0.0
        %561 = vmatprep.subr.mxu0 0.0
        %562 = vmatpush1.msra.mxu0 0.0
        %563 = vmatprep.subr.mxu0 0.0
        %564 = vmatpush1.msra.mxu0 0.0
        %565 = vmatprep.subr.mxu0 0.0
        %566 = vmatpush1.msra.mxu0 0.0
        %567 = vmatprep.subr.mxu0 0.0
        %568 = vmatpush1.msra.mxu0 0.0
        %569 = vmatprep.subr.mxu0 0.0
        %570 = vmatpush1.msra.mxu0 0.0
        %571 = vmatprep.subr.mxu0 0.0
        %572 = vmatpush1.msra.mxu0 0.0
        %573 = vmatprep.subr.mxu0 0.0
        %574 = vmatpush1.msra.mxu0 0.0
        %575 = vmatprep.subr.mxu0 0.0
        %576 = vmatpush1.msra.mxu0 0.0
        %577 = vmatprep.subr.mxu0 0.0
        %578 = vmatpush1.msra.mxu0 0.0
        %579 = vmatprep.subr.mxu0 0.0
        %580 = vmatpush1.msra.mxu0 0.0
        %581 = vmatprep.subr.mxu0 0.0
        %582 = vmatpush1.msra.mxu0 0.0
        %583 = vmatprep.subr.mxu0 0.0
        %584 = vmatpush1.msra.mxu0 0.0
        %585 = vmatprep.subr.mxu0 0.0
        %586 = vmatpush1.msra.mxu0 0.0
        %587 = vmatprep.subr.mxu0 0.0
        %588 = vmatpush1.msra.mxu0 0.0
        %589 = vmatprep.subr.mxu0 0.0
        %590 = vmatpush1.msra.mxu0 0.0
        %591 = vmatprep.mubr.f32.mxu0 0.0
        %592 = vmatmul.mubr.f32.gmra.mrb[0].mxu0 %v525
        %v593 = vpop.f32.mrb[0].mxu0
        %v594 = vadd.f32 0.0, %v593
        %v595 = vpop.f32.mrb[0].mxu0
        %596 = vdwg.mxu0
        %v597 = vmul.f32 %v594, 0.17677669
        %v598 = vld [vmem:[#allocation11] sm:$0xff]
        %v599 = vld [vmem:[#allocation11 + $0x8] sm:$0xff]
        %v600 = vld [vmem:[#allocation11 + $0x10] sm:$0xff]
        %v601 = vld [vmem:[#allocation11 + $0x18] sm:$0xff]
        %v603 = vsel %vm523, %v515, 0
        %605 = vmatprep.subr.mxu0 0.0
        %606 = vmatpush1.msra.mxu0 %v598
        %607 = vmatprep.subr.mxu0 0.0
        %608 = vmatpush1.msra.mxu0 %v599
        %609 = vmatprep.subr.mxu0 0.0
        %610 = vmatpush1.msra.mxu0 %v600
        %611 = vmatprep.subr.mxu0 0.0
        %612 = vmatpush1.msra.mxu0 %v601
        %613 = vmatprep.subr.mxu0 0.0
        %614 = vmatpush1.msra.mxu0 0.0
        %615 = vmatprep.subr.mxu0 0.0
        %616 = vmatpush1.msra.mxu0 0.0
        %617 = vmatprep.subr.mxu0 0.0
        %618 = vmatpush1.msra.mxu0 0.0
        %619 = vmatprep.subr.mxu0 0.0
        %620 = vmatpush1.msra.mxu0 0.0
        %621 = vmatprep.subr.mxu0 0.0
        %622 = vmatpush1.msra.mxu0 0.0
        %623 = vmatprep.subr.mxu0 0.0
        %624 = vmatpush1.msra.mxu0 0.0
        %625 = vmatprep.subr.mxu0 0.0
        %626 = vmatpush1.msra.mxu0 0.0
        %627 = vmatprep.subr.mxu0 0.0
        %628 = vmatpush1.msra.mxu0 0.0
        %629 = vmatprep.subr.mxu0 0.0
        %630 = vmatpush1.msra.mxu0 0.0
        %631 = vmatprep.subr.mxu0 0.0
        %632 = vmatpush1.msra.mxu0 0.0
        %633 = vmatprep.subr.mxu0 0.0
        %634 = vmatpush1.msra.mxu0 0.0
        %635 = vmatprep.subr.mxu0 0.0
        %636 = vmatpush1.msra.mxu0 0.0
        %637 = vmatprep.subr.mxu0 0.0
        %638 = vmatpush1.msra.mxu0 0.0
        %639 = vmatprep.subr.mxu0 0.0
        %640 = vmatpush1.msra.mxu0 0.0
        %641 = vmatprep.subr.mxu0 0.0
        %642 = vmatpush1.msra.mxu0 0.0
        %643 = vmatprep.subr.mxu0 0.0
        %644 = vmatpush1.msra.mxu0 0.0
        %645 = vmatprep.subr.mxu0 0.0
        %646 = vmatpush1.msra.mxu0 0.0
        %647 = vmatprep.subr.mxu0 0.0
        %648 = vmatpush1.msra.mxu0 0.0
        %649 = vmatprep.subr.mxu0 0.0
        %650 = vmatpush1.msra.mxu0 0.0
        %651 = vmatprep.subr.mxu0 0.0
        %652 = vmatpush1.msra.mxu0 0.0
        %653 = vmatprep.subr.mxu0 0.0
        %654 = vmatpush1.msra.mxu0 0.0
        %655 = vmatprep.subr.mxu0 0.0
        %656 = vmatpush1.msra.mxu0 0.0
        %657 = vmatprep.subr.mxu0 0.0
        %658 = vmatpush1.msra.mxu0 0.0
        %659 = vmatprep.subr.mxu0 0.0
        %660 = vmatpush1.msra.mxu0 0.0
        %661 = vmatprep.subr.mxu0 0.0
        %662 = vmatpush1.msra.mxu0 0.0
        %663 = vmatprep.subr.mxu0 0.0
        %664 = vmatpush1.msra.mxu0 0.0
        %665 = vmatprep.subr.mxu0 0.0
        %666 = vmatpush1.msra.mxu0 0.0
        %667 = vmatprep.subr.mxu0 0.0
        %668 = vmatpush1.msra.mxu0 0.0
        %669 = vmatprep.mubr.f32.mxu0 0.0
        %670 = vmatmul.mubr.f32.gmra.mrb[0].mxu0 %v603
        %v671 = vpop.f32.mrb[0].mxu0
        %v672 = vadd.f32 0.0, %v671
        %v673 = vpop.f32.mrb[0].mxu0
        %674 = vdwg.mxu0
        %v675 = vld [vmem:[#allocation13] sm:$0xff]
        %v676 = vld [vmem:[#allocation13 + $0x8] sm:$0xff]
        %v677 = vld [vmem:[#allocation13 + $0x10] sm:$0xff]
        %v678 = vld [vmem:[#allocation13 + $0x18] sm:$0xff]
        %v680 = vsel %vm523, %v516, 0
        %682 = vmatprep.subr.mxu0 0.0
        %683 = vmatpush1.msra.mxu0 %v675
        %684 = vmatprep.subr.mxu0 0.0
        %685 = vmatpush1.msra.mxu0 %v676
        %686 = vmatprep.subr.mxu0 0.0
        %687 = vmatpush1.msra.mxu0 %v677
        %688 = vmatprep.subr.mxu0 0.0
        %689 = vmatpush1.msra.mxu0 %v678
        %690 = vmatprep.subr.mxu0 0.0
        %691 = vmatpush1.msra.mxu0 0.0
        %692 = vmatprep.subr.mxu0 0.0
        %693 = vmatpush1.msra.mxu0 0.0
        %694 = vmatprep.subr.mxu0 0.0
        %695 = vmatpush1.msra.mxu0 0.0
        %696 = vmatprep.subr.mxu0 0.0
        %697 = vmatpush1.msra.mxu0 0.0
        %698 = vmatprep.subr.mxu0 0.0
        %699 = vmatpush1.msra.mxu0 0.0
        %700 = vmatprep.subr.mxu0 0.0
        %701 = vmatpush1.msra.mxu0 0.0
        %702 = vmatprep.subr.mxu0 0.0
        %703 = vmatpush1.msra.mxu0 0.0
        %704 = vmatprep.subr.mxu0 0.0
        %705 = vmatpush1.msra.mxu0 0.0
        %706 = vmatprep.subr.mxu0 0.0
        %707 = vmatpush1.msra.mxu0 0.0
        %708 = vmatprep.subr.mxu0 0.0
        %709 = vmatpush1.msra.mxu0 0.0
        %710 = vmatprep.subr.mxu0 0.0
        %711 = vmatpush1.msra.mxu0 0.0
        %712 = vmatprep.subr.mxu0 0.0
        %713 = vmatpush1.msra.mxu0 0.0
        %714 = vmatprep.subr.mxu0 0.0
        %715 = vmatpush1.msra.mxu0 0.0
        %716 = vmatprep.subr.mxu0 0.0
        %717 = vmatpush1.msra.mxu0 0.0
        %718 = vmatprep.subr.mxu0 0.0
        %719 = vmatpush1.msra.mxu0 0.0
        %720 = vmatprep.subr.mxu0 0.0
        %721 = vmatpush1.msra.mxu0 0.0
        %722 = vmatprep.subr.mxu0 0.0
        %723 = vmatpush1.msra.mxu0 0.0
        %724 = vmatprep.subr.mxu0 0.0
        %725 = vmatpush1.msra.mxu0 0.0
        %726 = vmatprep.subr.mxu0 0.0
        %727 = vmatpush1.msra.mxu0 0.0
        %728 = vmatprep.subr.mxu0 0.0
        %729 = vmatpush1.msra.mxu0 0.0
        %730 = vmatprep.subr.mxu0 0.0
        %731 = vmatpush1.msra.mxu0 0.0
        %732 = vmatprep.subr.mxu0 0.0
        %733 = vmatpush1.msra.mxu0 0.0
        %734 = vmatprep.subr.mxu0 0.0
        %735 = vmatpush1.msra.mxu0 0.0
        %736 = vmatprep.subr.mxu0 0.0
        %737 = vmatpush1.msra.mxu0 0.0
        %738 = vmatprep.subr.mxu0 0.0
        %739 = vmatpush1.msra.mxu0 0.0
        %740 = vmatprep.subr.mxu0 0.0
        %741 = vmatpush1.msra.mxu0 0.0
        %742 = vmatprep.subr.mxu0 0.0
        %743 = vmatpush1.msra.mxu0 0.0
        %744 = vmatprep.subr.mxu0 0.0
        %745 = vmatpush1.msra.mxu0 0.0
        %746 = vmatprep.mubr.f32.mxu0 0.0
        %747 = vmatmul.mubr.f32.gmra.mrb[0].mxu0 %v680
        %v748 = vpop.f32.mrb[0].mxu0
        %v749 = vadd.f32 0.0, %v748
        %v750 = vpop.f32.mrb[0].mxu0
        %751 = vdwg.mxu0
        %vm752 = vcmask 64512
        %v754 = vsel %vm752, %v597, 0
        %v757 = vsel %vm752, %v672, 0
        %759 = vmatprep.subr.mxu0 0.0
        %760 = vmatpush1.xpose.msra.mxu0 %v757
        %761 = vmatprep.subr.mxu0 0.0
        %762 = vmatpush1.xpose.msra.mxu0 0.0
        %763 = vmatprep.subr.mxu0 0.0
        %764 = vmatpush1.xpose.msra.mxu0 0.0
        %765 = vmatprep.subr.mxu0 0.0
        %766 = vmatpush1.xpose.msra.mxu0 0.0
        %767 = vmatprep.subr.mxu0 0.0
        %768 = vmatpush1.xpose.msra.mxu0 0.0
        %769 = vmatprep.subr.mxu0 0.0
        %770 = vmatpush1.xpose.msra.mxu0 0.0
        %771 = vmatprep.subr.mxu0 0.0
        %772 = vmatpush1.xpose.msra.mxu0 0.0
        %773 = vmatprep.subr.mxu0 0.0
        %774 = vmatpush1.xpose.msra.mxu0 0.0
        %775 = vmatprep.subr.mxu0 0.0
        %776 = vmatpush1.xpose.msra.mxu0 0.0
        %777 = vmatprep.subr.mxu0 0.0
        %778 = vmatpush1.xpose.msra.mxu0 0.0
        %779 = vmatprep.subr.mxu0 0.0
        %780 = vmatpush1.xpose.msra.mxu0 0.0
        %781 = vmatprep.subr.mxu0 0.0
        %782 = vmatpush1.xpose.msra.mxu0 0.0
        %783 = vmatprep.subr.mxu0 0.0
        %784 = vmatpush1.xpose.msra.mxu0 0.0
        %785 = vmatprep.subr.mxu0 0.0
        %786 = vmatpush1.xpose.msra.mxu0 0.0
        %787 = vmatprep.subr.mxu0 0.0
        %788 = vmatpush1.xpose.msra.mxu0 0.0
        %789 = vmatprep.subr.mxu0 0.0
        %790 = vmatpush1.xpose.msra.mxu0 0.0
        %791 = vmatprep.subr.mxu0 0.0
        %792 = vmatpush1.xpose.msra.mxu0 0.0
        %793 = vmatprep.subr.mxu0 0.0
        %794 = vmatpush1.xpose.msra.mxu0 0.0
        %795 = vmatprep.subr.mxu0 0.0
        %796 = vmatpush1.xpose.msra.mxu0 0.0
        %797 = vmatprep.subr.mxu0 0.0
        %798 = vmatpush1.xpose.msra.mxu0 0.0
        %799 = vmatprep.subr.mxu0 0.0
        %800 = vmatpush1.xpose.msra.mxu0 0.0
        %801 = vmatprep.subr.mxu0 0.0
        %802 = vmatpush1.xpose.msra.mxu0 0.0
        %803 = vmatprep.subr.mxu0 0.0
        %804 = vmatpush1.xpose.msra.mxu0 0.0
        %805 = vmatprep.subr.mxu0 0.0
        %806 = vmatpush1.xpose.msra.mxu0 0.0
        %807 = vmatprep.subr.mxu0 0.0
        %808 = vmatpush1.xpose.msra.mxu0 0.0
        %809 = vmatprep.subr.mxu0 0.0
        %810 = vmatpush1.xpose.msra.mxu0 0.0
        %811 = vmatprep.subr.mxu0 0.0
        %812 = vmatpush1.xpose.msra.mxu0 0.0
        %813 = vmatprep.subr.mxu0 0.0
        %814 = vmatpush1.xpose.msra.mxu0 0.0
        %815 = vmatprep.subr.mxu0 0.0
        %816 = vmatpush1.xpose.msra.mxu0 0.0
        %817 = vmatprep.subr.mxu0 0.0
        %818 = vmatpush1.xpose.msra.mxu0 0.0
        %819 = vmatprep.subr.mxu0 0.0
        %820 = vmatpush1.xpose.msra.mxu0 0.0
        %821 = vmatprep.subr.mxu0 0.0
        %822 = vmatpush1.xpose.msra.mxu0 0.0
        %823 = vmatprep.mubr.f32.mxu0 0.0
        %824 = vmatmul.mubr.f32.gmra.mrb[0].mxu0 %v754
        %v825 = vpop.f32.mrb[0].mxu0
        %v826 = vadd.f32 0.0, %v825
        %v827 = vpop.f32.mrb[0].mxu0
        %828 = vdwg.mxu0
        %v829 = vsel %vm518, -1e+20, %v826
        %v830 = vsel %vm752, %v829, -inf
        %831 = vmax.xlane.f32.xlu0 %v830
        %v832 = vpop.xlane.xlu0 %831
        %v833 = vsub.f32 %v829, %v832
        %v834 = vmul.f32 %v833, 1.442695
        %v835 = vpow.pop %v834
        %v836 = vsel %vm752, %v835, 0.0
        %837 = vadd.xlane.f32.xlu0 %v836
        %v838 = vpop.xlane.xlu0 %837
        %v839 = vrcp.pop %v838
        %v840 = vmul.f32 %v835, %v839
        %v842 = vsel %vm752, %v840, 0
        %844 = vmatprep.subr.mxu0 0.0
        %845 = vmatpush1.msra.mxu0 %v749
        %846 = vmatprep.subr.mxu0 0.0
        %847 = vmatpush1.msra.mxu0 0.0
        %848 = vmatprep.subr.mxu0 0.0
        %849 = vmatpush1.msra.mxu0 0.0
        %850 = vmatprep.subr.mxu0 0.0
        %851 = vmatpush1.msra.mxu0 0.0
        %852 = vmatprep.subr.mxu0 0.0
        %853 = vmatpush1.msra.mxu0 0.0
        %854 = vmatprep.subr.mxu0 0.0
        %855 = vmatpush1.msra.mxu0 0.0
        %856 = vmatprep.subr.mxu0 0.0
        %857 = vmatpush1.msra.mxu0 0.0
        %858 = vmatprep.subr.mxu0 0.0
        %859 = vmatpush1.msra.mxu0 0.0
        %860 = vmatprep.subr.mxu0 0.0
        %861 = vmatpush1.msra.mxu0 0.0
        %862 = vmatprep.subr.mxu0 0.0
        %863 = vmatpush1.msra.mxu0 0.0
        %864 = vmatprep.subr.mxu0 0.0
        %865 = vmatpush1.msra.mxu0 0.0
        %866 = vmatprep.subr.mxu0 0.0
        %867 = vmatpush1.msra.mxu0 0.0
        %868 = vmatprep.subr.mxu0 0.0
        %869 = vmatpush1.msra.mxu0 0.0
        %870 = vmatprep.subr.mxu0 0.0
        %871 = vmatpush1.msra.mxu0 0.0
        %872 = vmatprep.subr.mxu0 0.0
        %873 = vmatpush1.msra.mxu0 0.0
        %874 = vmatprep.subr.mxu0 0.0
        %875 = vmatpush1.msra.mxu0 0.0
        %876 = vmatprep.subr.mxu0 0.0
        %877 = vmatpush1.msra.mxu0 0.0
        %878 = vmatprep.subr.mxu0 0.0
        %879 = vmatpush1.msra.mxu0 0.0
        %880 = vmatprep.subr.mxu0 0.0
        %881 = vmatpush1.msra.mxu0 0.0
        %882 = vmatprep.subr.mxu0 0.0
        %883 = vmatpush1.msra.mxu0 0.0
        %884 = vmatprep.subr.mxu0 0.0
        %885 = vmatpush1.msra.mxu0 0.0
        %886 = vmatprep.subr.mxu0 0.0
        %887 = vmatpush1.msra.mxu0 0.0
        %888 = vmatprep.subr.mxu0 0.0
        %889 = vmatpush1.msra.mxu0 0.0
        %890 = vmatprep.subr.mxu0 0.0
        %891 = vmatpush1.msra.mxu0 0.0
        %892 = vmatprep.subr.mxu0 0.0
        %893 = vmatpush1.msra.mxu0 0.0
        %894 = vmatprep.subr.mxu0 0.0
        %895 = vmatpush1.msra.mxu0 0.0
        %896 = vmatprep.subr.mxu0 0.0
        %897 = vmatpush1.msra.mxu0 0.0
        %898 = vmatprep.subr.mxu0 0.0
        %899 = vmatpush1.msra.mxu0 0.0
        %900 = vmatprep.subr.mxu0 0.0
        %901 = vmatpush1.msra.mxu0 0.0
        %902 = vmatprep.subr.mxu0 0.0
        %903 = vmatpush1.msra.mxu0 0.0
        %904 = vmatprep.subr.mxu0 0.0
        %905 = vmatpush1.msra.mxu0 0.0
        %906 = vmatprep.subr.mxu0 0.0
        %907 = vmatpush1.msra.mxu0 0.0
        %908 = vmatprep.mubr.f32.mxu0 0.0
        %909 = vmatmul.mubr.f32.gmra.mrb[0].mxu0 %v842
        %v910 = vpop.f32.mrb[0].mxu0
        %v911 = vadd.f32 0.0, %v910
        %v912 = vpop.f32.mrb[0].mxu0
        %913 = vdwg.mxu0
        %914 = vrot.lane.b32.xlu0 %v597, 120
        %v915 = vpop.permute.xlu0 %914
        %916 = vrot.lane.b32.xlu0 %v672, 120
        %v917 = vpop.permute.xlu0 %916
        %v918 = vsel %vm752, %v915, 0
        %v920 = vsel %vm752, %v917, 0
        %922 = vmatprep.subr.mxu0 0.0
        %923 = vmatpush1.xpose.msra.mxu0 %v920
        %924 = vmatprep.subr.mxu0 0.0
        %925 = vmatpush1.xpose.msra.mxu0 0.0
        %926 = vmatprep.subr.mxu0 0.0
        %927 = vmatpush1.xpose.msra.mxu0 0.0
        %928 = vmatprep.subr.mxu0 0.0
        %929 = vmatpush1.xpose.msra.mxu0 0.0
        %930 = vmatprep.subr.mxu0 0.0
        %931 = vmatpush1.xpose.msra.mxu0 0.0
        %932 = vmatprep.subr.mxu0 0.0
        %933 = vmatpush1.xpose.msra.mxu0 0.0
        %934 = vmatprep.subr.mxu0 0.0
        %935 = vmatpush1.xpose.msra.mxu0 0.0
        %936 = vmatprep.subr.mxu0 0.0
        %937 = vmatpush1.xpose.msra.mxu0 0.0
        %938 = vmatprep.subr.mxu0 0.0
        %939 = vmatpush1.xpose.msra.mxu0 0.0
        %940 = vmatprep.subr.mxu0 0.0
        %941 = vmatpush1.xpose.msra.mxu0 0.0
        %942 = vmatprep.subr.mxu0 0.0
        %943 = vmatpush1.xpose.msra.mxu0 0.0
        %944 = vmatprep.subr.mxu0 0.0
        %945 = vmatpush1.xpose.msra.mxu0 0.0
        %946 = vmatprep.subr.mxu0 0.0
        %947 = vmatpush1.xpose.msra.mxu0 0.0
        %948 = vmatprep.subr.mxu0 0.0
        %949 = vmatpush1.xpose.msra.mxu0 0.0
        %950 = vmatprep.subr.mxu0 0.0
        %951 = vmatpush1.xpose.msra.mxu0 0.0
        %952 = vmatprep.subr.mxu0 0.0
        %953 = vmatpush1.xpose.msra.mxu0 0.0
        %954 = vmatprep.subr.mxu0 0.0
        %955 = vmatpush1.xpose.msra.mxu0 0.0
        %956 = vmatprep.subr.mxu0 0.0
        %957 = vmatpush1.xpose.msra.mxu0 0.0
        %958 = vmatprep.subr.mxu0 0.0
        %959 = vmatpush1.xpose.msra.mxu0 0.0
        %960 = vmatprep.subr.mxu0 0.0
        %961 = vmatpush1.xpose.msra.mxu0 0.0
        %962 = vmatprep.subr.mxu0 0.0
        %963 = vmatpush1.xpose.msra.mxu0 0.0
        %964 = vmatprep.subr.mxu0 0.0
        %965 = vmatpush1.xpose.msra.mxu0 0.0
        %966 = vmatprep.subr.mxu0 0.0
        %967 = vmatpush1.xpose.msra.mxu0 0.0
        %968 = vmatprep.subr.mxu0 0.0
        %969 = vmatpush1.xpose.msra.mxu0 0.0
        %970 = vmatprep.subr.mxu0 0.0
        %971 = vmatpush1.xpose.msra.mxu0 0.0
        %972 = vmatprep.subr.mxu0 0.0
        %973 = vmatpush1.xpose.msra.mxu0 0.0
        %974 = vmatprep.subr.mxu0 0.0
        %975 = vmatpush1.xpose.msra.mxu0 0.0
        %976 = vmatprep.subr.mxu0 0.0
        %977 = vmatpush1.xpose.msra.mxu0 0.0
        %978 = vmatprep.subr.mxu0 0.0
        %979 = vmatpush1.xpose.msra.mxu0 0.0
        %980 = vmatprep.subr.mxu0 0.0
        %981 = vmatpush1.xpose.msra.mxu0 0.0
        %982 = vmatprep.subr.mxu0 0.0
        %983 = vmatpush1.xpose.msra.mxu0 0.0
        %984 = vmatprep.subr.mxu0 0.0
        %985 = vmatpush1.xpose.msra.mxu0 0.0
        %986 = vmatprep.mubr.f32.mxu0 0.0
        %987 = vmatmul.mubr.f32.gmra.mrb[0].mxu0 %v918
        %v988 = vpop.f32.mrb[0].mxu0
        %v989 = vadd.f32 0.0, %v988
        %v990 = vpop.f32.mrb[0].mxu0
        %991 = vdwg.mxu0
        %v992 = vsel %vm518, -1e+20, %v989
        %v993 = vsel %vm752, %v992, -inf
        %994 = vmax.xlane.f32.xlu0 %v993
        %v995 = vpop.xlane.xlu0 %994
        %v996 = vsub.f32 %v992, %v995
        %v997 = vmul.f32 %v996, 1.442695
        %v998 = vpow.pop %v997
        %v999 = vsel %vm752, %v998, 0.0
        %1000 = vadd.xlane.f32.xlu0 %v999
        %v1001 = vpop.xlane.xlu0 %1000
        %v1002 = vrcp.pop %v1001
        %v1003 = vmul.f32 %v998, %v1002
        %1005 = vrot.lane.b32.xlu0 %v749, 120
        %v1006 = vpop.permute.xlu0 %1005
        %v1009 = vsel %vm752, %v1003, 0
        %1011 = vmatprep.subr.mxu0 0.0
        %1012 = vmatpush1.msra.mxu0 %v1006
        %1013 = vmatprep.subr.mxu0 0.0
        %1014 = vmatpush1.msra.mxu0 0.0
        %1015 = vmatprep.subr.mxu0 0.0
        %1016 = vmatpush1.msra.mxu0 0.0
        %1017 = vmatprep.subr.mxu0 0.0
        %1018 = vmatpush1.msra.mxu0 0.0
        %1019 = vmatprep.subr.mxu0 0.0
        %1020 = vmatpush1.msra.mxu0 0.0
        %1021 = vmatprep.subr.mxu0 0.0
        %1022 = vmatpush1.msra.mxu0 0.0
        %1023 = vmatprep.subr.mxu0 0.0
        %1024 = vmatpush1.msra.mxu0 0.0
        %1025 = vmatprep.subr.mxu0 0.0
        %1026 = vmatpush1.msra.mxu0 0.0
        %1027 = vmatprep.subr.mxu0 0.0
        %1028 = vmatpush1.msra.mxu0 0.0
        %1029 = vmatprep.subr.mxu0 0.0
        %1030 = vmatpush1.msra.mxu0 0.0
        %1031 = vmatprep.subr.mxu0 0.0
        %1032 = vmatpush1.msra.mxu0 0.0
        %1033 = vmatprep.subr.mxu0 0.0
        %1034 = vmatpush1.msra.mxu0 0.0
        %1035 = vmatprep.subr.mxu0 0.0
        %1036 = vmatpush1.msra.mxu0 0.0
        %1037 = vmatprep.subr.mxu0 0.0
        %1038 = vmatpush1.msra.mxu0 0.0
        %1039 = vmatprep.subr.mxu0 0.0
        %1040 = vmatpush1.msra.mxu0 0.0
        %1041 = vmatprep.subr.mxu0 0.0
        %1042 = vmatpush1.msra.mxu0 0.0
        %1043 = vmatprep.subr.mxu0 0.0
        %1044 = vmatpush1.msra.mxu0 0.0
        %1045 = vmatprep.subr.mxu0 0.0
        %1046 = vmatpush1.msra.mxu0 0.0
        %1047 = vmatprep.subr.mxu0 0.0
        %1048 = vmatpush1.msra.mxu0 0.0
        %1049 = vmatprep.subr.mxu0 0.0
        %1050 = vmatpush1.msra.mxu0 0.0
        %1051 = vmatprep.subr.mxu0 0.0
        %1052 = vmatpush1.msra.mxu0 0.0
        %1053 = vmatprep.subr.mxu0 0.0
        %1054 = vmatpush1.msra.mxu0 0.0
        %1055 = vmatprep.subr.mxu0 0.0
        %1056 = vmatpush1.msra.mxu0 0.0
        %1057 = vmatprep.subr.mxu0 0.0
        %1058 = vmatpush1.msra.mxu0 0.0
        %1059 = vmatprep.subr.mxu0 0.0
        %1060 = vmatpush1.msra.mxu0 0.0
        %1061 = vmatprep.subr.mxu0 0.0
        %1062 = vmatpush1.msra.mxu0 0.0
        %1063 = vmatprep.subr.mxu0 0.0
        %1064 = vmatpush1.msra.mxu0 0.0
        %1065 = vmatprep.subr.mxu0 0.0
        %1066 = vmatpush1.msra.mxu0 0.0
        %1067 = vmatprep.subr.mxu0 0.0
        %1068 = vmatpush1.msra.mxu0 0.0
        %1069 = vmatprep.subr.mxu0 0.0
        %1070 = vmatpush1.msra.mxu0 0.0
        %1071 = vmatprep.subr.mxu0 0.0
        %1072 = vmatpush1.msra.mxu0 0.0
        %1073 = vmatprep.subr.mxu0 0.0
        %1074 = vmatpush1.msra.mxu0 0.0
        %1075 = vmatprep.mubr.f32.mxu0 0.0
        %1076 = vmatmul.mubr.f32.gmra.mrb[0].mxu0 %v1009
        %v1077 = vpop.f32.mrb[0].mxu0
        %v1078 = vadd.f32 0.0, %v1077
        %v1079 = vpop.f32.mrb[0].mxu0
        %1080 = vdwg.mxu0
        %1081 = vrot.lane.b32.xlu0 %v597, 112
        %v1082 = vpop.permute.xlu0 %1081
        %1083 = vrot.lane.b32.xlu0 %v672, 112
        %v1084 = vpop.permute.xlu0 %1083
        %v1085 = vsel %vm752, %v1082, 0
        %v1087 = vsel %vm752, %v1084, 0
        %1089 = vmatprep.subr.mxu0 0.0
        %1090 = vmatpush1.xpose.msra.mxu0 %v1087
        %1091 = vmatprep.subr.mxu0 0.0
        %1092 = vmatpush1.xpose.msra.mxu0 0.0
        %1093 = vmatprep.subr.mxu0 0.0
        %1094 = vmatpush1.xpose.msra.mxu0 0.0
        %1095 = vmatprep.subr.mxu0 0.0
        %1096 = vmatpush1.xpose.msra.mxu0 0.0
        %1097 = vmatprep.subr.mxu0 0.0
        %1098 = vmatpush1.xpose.msra.mxu0 0.0
        %1099 = vmatprep.subr.mxu0 0.0
        %1100 = vmatpush1.xpose.msra.mxu0 0.0
        %1101 = vmatprep.subr.mxu0 0.0
        %1102 = vmatpush1.xpose.msra.mxu0 0.0
        %1103 = vmatprep.subr.mxu0 0.0
        %1104 = vmatpush1.xpose.msra.mxu0 0.0
        %1105 = vmatprep.subr.mxu0 0.0
        %1106 = vmatpush1.xpose.msra.mxu0 0.0
        %1107 = vmatprep.subr.mxu0 0.0
        %1108 = vmatpush1.xpose.msra.mxu0 0.0
        %1109 = vmatprep.subr.mxu0 0.0
        %1110 = vmatpush1.xpose.msra.mxu0 0.0
        %1111 = vmatprep.subr.mxu0 0.0
        %1112 = vmatpush1.xpose.msra.mxu0 0.0
        %1113 = vmatprep.subr.mxu0 0.0
        %1114 = vmatpush1.xpose.msra.mxu0 0.0
        %1115 = vmatprep.subr.mxu0 0.0
        %1116 = vmatpush1.xpose.msra.mxu0 0.0
        %1117 = vmatprep.subr.mxu0 0.0
        %1118 = vmatpush1.xpose.msra.mxu0 0.0
        %1119 = vmatprep.subr.mxu0 0.0
        %1120 = vmatpush1.xpose.msra.mxu0 0.0
        %1121 = vmatprep.subr.mxu0 0.0
        %1122 = vmatpush1.xpose.msra.mxu0 0.0
        %1123 = vmatprep.subr.mxu0 0.0
        %1124 = vmatpush1.xpose.msra.mxu0 0.0
        %1125 = vmatprep.subr.mxu0 0.0
        %1126 = vmatpush1.xpose.msra.mxu0 0.0
        %1127 = vmatprep.subr.mxu0 0.0
        %1128 = vmatpush1.xpose.msra.mxu0 0.0
        %1129 = vmatprep.subr.mxu0 0.0
        %1130 = vmatpush1.xpose.msra.mxu0 0.0
        %1131 = vmatprep.subr.mxu0 0.0
        %1132 = vmatpush1.xpose.msra.mxu0 0.0
        %1133 = vmatprep.subr.mxu0 0.0
        %1134 = vmatpush1.xpose.msra.mxu0 0.0
        %1135 = vmatprep.subr.mxu0 0.0
        %1136 = vmatpush1.xpose.msra.mxu0 0.0
        %1137 = vmatprep.subr.mxu0 0.0
        %1138 = vmatpush1.xpose.msra.mxu0 0.0
        %1139 = vmatprep.subr.mxu0 0.0
        %1140 = vmatpush1.xpose.msra.mxu0 0.0
        %1141 = vmatprep.subr.mxu0 0.0
        %1142 = vmatpush1.xpose.msra.mxu0 0.0
        %1143 = vmatprep.subr.mxu0 0.0
        %1144 = vmatpush1.xpose.msra.mxu0 0.0
        %1145 = vmatprep.subr.mxu0 0.0
        %1146 = vmatpush1.xpose.msra.mxu0 0.0
        %1147 = vmatprep.subr.mxu0 0.0
        %1148 = vmatpush1.xpose.msra.mxu0 0.0
        %1149 = vmatprep.subr.mxu0 0.0
        %1150 = vmatpush1.xpose.msra.mxu0 0.0
        %1151 = vmatprep.subr.mxu0 0.0
        %1152 = vmatpush1.xpose.msra.mxu0 0.0
        %1153 = vmatprep.mubr.f32.mxu0 0.0
        %1154 = vmatmul.mubr.f32.gmra.mrb[0].mxu0 %v1085
        %v1155 = vpop.f32.mrb[0].mxu0
        %v1156 = vadd.f32 0.0, %v1155
        %v1157 = vpop.f32.mrb[0].mxu0
        %1158 = vdwg.mxu0
        %v1159 = vsel %vm518, -1e+20, %v1156
        %v1160 = vsel %vm752, %v1159, -inf
        %1161 = vmax.xlane.f32.xlu0 %v1160
        %v1162 = vpop.xlane.xlu0 %1161
        %v1163 = vsub.f32 %v1159, %v1162
        %v1164 = vmul.f32 %v1163, 1.442695
        %v1165 = vpow.pop %v1164
        %v1166 = vsel %vm752, %v1165, 0.0
        %1167 = vadd.xlane.f32.xlu0 %v1166
        %v1168 = vpop.xlane.xlu0 %1167
        %v1169 = vrcp.pop %v1168
        %v1170 = vmul.f32 %v1165, %v1169
        %1171 = vrot.lane.b32.xlu0 %v749, 112
        %v1172 = vpop.permute.xlu0 %1171
        %v1175 = vsel %vm752, %v1170, 0
        %1177 = vmatprep.subr.mxu0 0.0
        %1178 = vmatpush1.msra.mxu0 %v1172
        %1179 = vmatprep.subr.mxu0 0.0
        %1180 = vmatpush1.msra.mxu0 0.0
        %1181 = vmatprep.subr.mxu0 0.0
        %1182 = vmatpush1.msra.mxu0 0.0
        %1183 = vmatprep.subr.mxu0 0.0
        %1184 = vmatpush1.msra.mxu0 0.0
        %1185 = vmatprep.subr.mxu0 0.0
        %1186 = vmatpush1.msra.mxu0 0.0
        %1187 = vmatprep.subr.mxu0 0.0
        %1188 = vmatpush1.msra.mxu0 0.0
        %1189 = vmatprep.subr.mxu0 0.0
        %1190 = vmatpush1.msra.mxu0 0.0
        %1191 = vmatprep.subr.mxu0 0.0
        %1192 = vmatpush1.msra.mxu0 0.0
        %1193 = vmatprep.subr.mxu0 0.0
        %1194 = vmatpush1.msra.mxu0 0.0
        %1195 = vmatprep.subr.mxu0 0.0
        %1196 = vmatpush1.msra.mxu0 0.0
        %1197 = vmatprep.subr.mxu0 0.0
        %1198 = vmatpush1.msra.mxu0 0.0
        %1199 = vmatprep.subr.mxu0 0.0
        %1200 = vmatpush1.msra.mxu0 0.0
        %1201 = vmatprep.subr.mxu0 0.0
        %1202 = vmatpush1.msra.mxu0 0.0
        %1203 = vmatprep.subr.mxu0 0.0
        %1204 = vmatpush1.msra.mxu0 0.0
        %1205 = vmatprep.subr.mxu0 0.0
        %1206 = vmatpush1.msra.mxu0 0.0
        %1207 = vmatprep.subr.mxu0 0.0
        %1208 = vmatpush1.msra.mxu0 0.0
        %1209 = vmatprep.subr.mxu0 0.0
        %1210 = vmatpush1.msra.mxu0 0.0
        %1211 = vmatprep.subr.mxu0 0.0
        %1212 = vmatpush1.msra.mxu0 0.0
        %1213 = vmatprep.subr.mxu0 0.0
        %1214 = vmatpush1.msra.mxu0 0.0
        %1215 = vmatprep.subr.mxu0 0.0
        %1216 = vmatpush1.msra.mxu0 0.0
        %1217 = vmatprep.subr.mxu0 0.0
        %1218 = vmatpush1.msra.mxu0 0.0
        %1219 = vmatprep.subr.mxu0 0.0
        %1220 = vmatpush1.msra.mxu0 0.0
        %1221 = vmatprep.subr.mxu0 0.0
        %1222 = vmatpush1.msra.mxu0 0.0
        %1223 = vmatprep.subr.mxu0 0.0
        %1224 = vmatpush1.msra.mxu0 0.0
        %1225 = vmatprep.subr.mxu0 0.0
        %1226 = vmatpush1.msra.mxu0 0.0
        %1227 = vmatprep.subr.mxu0 0.0
        %1228 = vmatpush1.msra.mxu0 0.0
        %1229 = vmatprep.subr.mxu0 0.0
        %1230 = vmatpush1.msra.mxu0 0.0
        %1231 = vmatprep.subr.mxu0 0.0
        %1232 = vmatpush1.msra.mxu0 0.0
        %1233 = vmatprep.subr.mxu0 0.0
        %1234 = vmatpush1.msra.mxu0 0.0
        %1235 = vmatprep.subr.mxu0 0.0
        %1236 = vmatpush1.msra.mxu0 0.0
        %1237 = vmatprep.subr.mxu0 0.0
        %1238 = vmatpush1.msra.mxu0 0.0
        %1239 = vmatprep.subr.mxu0 0.0
        %1240 = vmatpush1.msra.mxu0 0.0
        %1241 = vmatprep.mubr.f32.mxu0 0.0
        %1242 = vmatmul.mubr.f32.gmra.mrb[0].mxu0 %v1175
        %v1243 = vpop.f32.mrb[0].mxu0
        %v1244 = vadd.f32 0.0, %v1243
        %v1245 = vpop.f32.mrb[0].mxu0
        %1246 = vdwg.mxu0
        %1247 = vrot.lane.b32.xlu0 %v597, 104
        %v1248 = vpop.permute.xlu0 %1247
        %1249 = vrot.lane.b32.xlu0 %v672, 104
        %v1250 = vpop.permute.xlu0 %1249
        %v1251 = vsel %vm752, %v1248, 0
        %v1253 = vsel %vm752, %v1250, 0
        %1255 = vmatprep.subr.mxu0 0.0
        %1256 = vmatpush1.xpose.msra.mxu0 %v1253
        %1257 = vmatprep.subr.mxu0 0.0
        %1258 = vmatpush1.xpose.msra.mxu0 0.0
        %1259 = vmatprep.subr.mxu0 0.0
        %1260 = vmatpush1.xpose.msra.mxu0 0.0
        %1261 = vmatprep.subr.mxu0 0.0
        %1262 = vmatpush1.xpose.msra.mxu0 0.0
        %1263 = vmatprep.subr.mxu0 0.0
        %1264 = vmatpush1.xpose.msra.mxu0 0.0
        %1265 = vmatprep.subr.mxu0 0.0
        %1266 = vmatpush1.xpose.msra.mxu0 0.0
        %1267 = vmatprep.subr.mxu0 0.0
        %1268 = vmatpush1.xpose.msra.mxu0 0.0
        %1269 = vmatprep.subr.mxu0 0.0
        %1270 = vmatpush1.xpose.msra.mxu0 0.0
        %1271 = vmatprep.subr.mxu0 0.0
        %1272 = vmatpush1.xpose.msra.mxu0 0.0
        %1273 = vmatprep.subr.mxu0 0.0
        %1274 = vmatpush1.xpose.msra.mxu0 0.0
        %1275 = vmatprep.subr.mxu0 0.0
        %1276 = vmatpush1.xpose.msra.mxu0 0.0
        %1277 = vmatprep.subr.mxu0 0.0
        %1278 = vmatpush1.xpose.msra.mxu0 0.0
        %1279 = vmatprep.subr.mxu0 0.0
        %1280 = vmatpush1.xpose.msra.mxu0 0.0
        %1281 = vmatprep.subr.mxu0 0.0
        %1282 = vmatpush1.xpose.msra.mxu0 0.0
        %1283 = vmatprep.subr.mxu0 0.0
        %1284 = vmatpush1.xpose.msra.mxu0 0.0
        %1285 = vmatprep.subr.mxu0 0.0
        %1286 = vmatpush1.xpose.msra.mxu0 0.0
        %1287 = vmatprep.subr.mxu0 0.0
        %1288 = vmatpush1.xpose.msra.mxu0 0.0
        %1289 = vmatprep.subr.mxu0 0.0
        %1290 = vmatpush1.xpose.msra.mxu0 0.0
        %1291 = vmatprep.subr.mxu0 0.0
        %1292 = vmatpush1.xpose.msra.mxu0 0.0
        %1293 = vmatprep.subr.mxu0 0.0
        %1294 = vmatpush1.xpose.msra.mxu0 0.0
        %1295 = vmatprep.subr.mxu0 0.0
        %1296 = vmatpush1.xpose.msra.mxu0 0.0
        %1297 = vmatprep.subr.mxu0 0.0
        %1298 = vmatpush1.xpose.msra.mxu0 0.0
        %1299 = vmatprep.subr.mxu0 0.0
        %1300 = vmatpush1.xpose.msra.mxu0 0.0
        %1301 = vmatprep.subr.mxu0 0.0
        %1302 = vmatpush1.xpose.msra.mxu0 0.0
        %1303 = vmatprep.subr.mxu0 0.0
        %1304 = vmatpush1.xpose.msra.mxu0 0.0
        %1305 = vmatprep.subr.mxu0 0.0
        %1306 = vmatpush1.xpose.msra.mxu0 0.0
        %1307 = vmatprep.subr.mxu0 0.0
        %1308 = vmatpush1.xpose.msra.mxu0 0.0
        %1309 = vmatprep.subr.mxu0 0.0
        %1310 = vmatpush1.xpose.msra.mxu0 0.0
        %1311 = vmatprep.subr.mxu0 0.0
        %1312 = vmatpush1.xpose.msra.mxu0 0.0
        %1313 = vmatprep.subr.mxu0 0.0
        %1314 = vmatpush1.xpose.msra.mxu0 0.0
        %1315 = vmatprep.subr.mxu0 0.0
        %1316 = vmatpush1.xpose.msra.mxu0 0.0
        %1317 = vmatprep.subr.mxu0 0.0
        %1318 = vmatpush1.xpose.msra.mxu0 0.0
        %1319 = vmatprep.mubr.f32.mxu0 0.0
        %1320 = vmatmul.mubr.f32.gmra.mrb[0].mxu0 %v1251
        %v1321 = vpop.f32.mrb[0].mxu0
        %v1322 = vadd.f32 0.0, %v1321
        %v1323 = vpop.f32.mrb[0].mxu0
        %1324 = vdwg.mxu0
        %v1325 = vsel %vm518, -1e+20, %v1322
        %v1326 = vsel %vm752, %v1325, -inf
        %1327 = vmax.xlane.f32.xlu0 %v1326
        %v1328 = vpop.xlane.xlu0 %1327
        %v1329 = vsub.f32 %v1325, %v1328
        %v1330 = vmul.f32 %v1329, 1.442695
        %v1331 = vpow.pop %v1330
        %v1332 = vsel %vm752, %v1331, 0.0
        %1333 = vadd.xlane.f32.xlu0 %v1332
        %v1334 = vpop.xlane.xlu0 %1333
        %v1335 = vrcp.pop %v1334
        %v1336 = vmul.f32 %v1331, %v1335
        %1337 = vrot.lane.b32.xlu0 %v749, 104
        %v1338 = vpop.permute.xlu0 %1337
        %v1341 = vsel %vm752, %v1336, 0
        %1343 = vmatprep.subr.mxu0 0.0
        %1344 = vmatpush1.msra.mxu0 %v1338
        %1345 = vmatprep.subr.mxu0 0.0
        %1346 = vmatpush1.msra.mxu0 0.0
        %1347 = vmatprep.subr.mxu0 0.0
        %1348 = vmatpush1.msra.mxu0 0.0
        %1349 = vmatprep.subr.mxu0 0.0
        %1350 = vmatpush1.msra.mxu0 0.0
        %1351 = vmatprep.subr.mxu0 0.0
        %1352 = vmatpush1.msra.mxu0 0.0
        %1353 = vmatprep.subr.mxu0 0.0
        %1354 = vmatpush1.msra.mxu0 0.0
        %1355 = vmatprep.subr.mxu0 0.0
        %1356 = vmatpush1.msra.mxu0 0.0
        %1357 = vmatprep.subr.mxu0 0.0
        %1358 = vmatpush1.msra.mxu0 0.0
        %1359 = vmatprep.subr.mxu0 0.0
        %1360 = vmatpush1.msra.mxu0 0.0
        %1361 = vmatprep.subr.mxu0 0.0
        %1362 = vmatpush1.msra.mxu0 0.0
        %1363 = vmatprep.subr.mxu0 0.0
        %1364 = vmatpush1.msra.mxu0 0.0
        %1365 = vmatprep.subr.mxu0 0.0
        %1366 = vmatpush1.msra.mxu0 0.0
        %1367 = vmatprep.subr.mxu0 0.0
        %1368 = vmatpush1.msra.mxu0 0.0
        %1369 = vmatprep.subr.mxu0 0.0
        %1370 = vmatpush1.msra.mxu0 0.0
        %1371 = vmatprep.subr.mxu0 0.0
        %1372 = vmatpush1.msra.mxu0 0.0
        %1373 = vmatprep.subr.mxu0 0.0
        %1374 = vmatpush1.msra.mxu0 0.0
        %1375 = vmatprep.subr.mxu0 0.0
        %1376 = vmatpush1.msra.mxu0 0.0
        %1377 = vmatprep.subr.mxu0 0.0
        %1378 = vmatpush1.msra.mxu0 0.0
        %1379 = vmatprep.subr.mxu0 0.0
        %1380 = vmatpush1.msra.mxu0 0.0
        %1381 = vmatprep.subr.mxu0 0.0
        %1382 = vmatpush1.msra.mxu0 0.0
        %1383 = vmatprep.subr.mxu0 0.0
        %1384 = vmatpush1.msra.mxu0 0.0
        %1385 = vmatprep.subr.mxu0 0.0
        %1386 = vmatpush1.msra.mxu0 0.0
        %1387 = vmatprep.subr.mxu0 0.0
        %1388 = vmatpush1.msra.mxu0 0.0
        %1389 = vmatprep.subr.mxu0 0.0
        %1390 = vmatpush1.msra.mxu0 0.0
        %1391 = vmatprep.subr.mxu0 0.0
        %1392 = vmatpush1.msra.mxu0 0.0
        %1393 = vmatprep.subr.mxu0 0.0
        %1394 = vmatpush1.msra.mxu0 0.0
        %1395 = vmatprep.subr.mxu0 0.0
        %1396 = vmatpush1.msra.mxu0 0.0
        %1397 = vmatprep.subr.mxu0 0.0
        %1398 = vmatpush1.msra.mxu0 0.0
        %1399 = vmatprep.subr.mxu0 0.0
        %1400 = vmatpush1.msra.mxu0 0.0
        %1401 = vmatprep.subr.mxu0 0.0
        %1402 = vmatpush1.msra.mxu0 0.0
        %1403 = vmatprep.subr.mxu0 0.0
        %1404 = vmatpush1.msra.mxu0 0.0
        %1405 = vmatprep.subr.mxu0 0.0
        %1406 = vmatpush1.msra.mxu0 0.0
        %1407 = vmatprep.mubr.f32.mxu0 0.0
        %1408 = vmatmul.mubr.f32.gmra.mrb[0].mxu0 %v1341
        %v1409 = vpop.f32.mrb[0].mxu0
        %v1410 = vadd.f32 0.0, %v1409
        %v1411 = vpop.f32.mrb[0].mxu0
        %1412 = vdwg.mxu0
        %1414 = vrot.lane.b32.xlu0 %v1078, 8
        %v1415 = vpop.permute.xlu0 %1414
        %1418 = vrot.lane.b32.xlu0 %v1244, 16
        %v1419 = vpop.permute.xlu0 %1418
        %1422 = vrot.lane.b32.xlu0 %v1410, 24
        %v1423 = vpop.permute.xlu0 %1422
        %v1425 = vsel %vm752, %v911, %v1415
        %vm1426 = vcmask 130048
        %v1427 = vsel %vm1426, %v1425, %v1419
        %vm1428 = vcmask 195584
        %v1429 = vsel %vm1428, %v1427, %v1423
        %v1430 = vld [vmem:[#allocation14] sm:$0xff]
        %v1431 = vld [vmem:[#allocation14 + $0x8] sm:$0xff]
        %v1432 = vld [vmem:[#allocation14 + $0x10] sm:$0xff]
        %v1433 = vld [vmem:[#allocation14 + $0x18] sm:$0xff]
        %v1434 = vld [vmem:[%s8] sm:$0x1]
        %v1436 = vlaneseq
        %v1437 = vshrl.u32 %v1436, 7
        %v1438 = vsub.s32 0, %v1437
        %v1439 = vrot.slane %v1434, %v1438
        %v1442 = vsel %vm523, %v1429, 0
        %1444 = vmatprep.subr.mxu0 0.0
        %1445 = vmatpush1.msra.mxu0 %v1430
        %1446 = vmatprep.subr.mxu0 0.0
        %1447 = vmatpush1.msra.mxu0 %v1431
        %1448 = vmatprep.subr.mxu0 0.0
        %1449 = vmatpush1.msra.mxu0 %v1432
        %1450 = vmatprep.subr.mxu0 0.0
        %1451 = vmatpush1.msra.mxu0 %v1433
        %1452 = vmatprep.subr.mxu0 0.0
        %1453 = vmatpush1.msra.mxu0 0.0
        %1454 = vmatprep.subr.mxu0 0.0
        %1455 = vmatpush1.msra.mxu0 0.0
        %1456 = vmatprep.subr.mxu0 0.0
        %1457 = vmatpush1.msra.mxu0 0.0
        %1458 = vmatprep.subr.mxu0 0.0
        %1459 = vmatpush1.msra.mxu0 0.0
        %1460 = vmatprep.subr.mxu0 0.0
        %1461 = vmatpush1.msra.mxu0 0.0
        %1462 = vmatprep.subr.mxu0 0.0
        %1463 = vmatpush1.msra.mxu0 0.0
        %1464 = vmatprep.subr.mxu0 0.0
        %1465 = vmatpush1.msra.mxu0 0.0
        %1466 = vmatprep.subr.mxu0 0.0
        %1467 = vmatpush1.msra.mxu0 0.0
        %1468 = vmatprep.subr.mxu0 0.0
        %1469 = vmatpush1.msra.mxu0 0.0
        %1470 = vmatprep.subr.mxu0 0.0
        %1471 = vmatpush1.msra.mxu0 0.0
        %1472 = vmatprep.subr.mxu0 0.0
        %1473 = vmatpush1.msra.mxu0 0.0
        %1474 = vmatprep.subr.mxu0 0.0
        %1475 = vmatpush1.msra.mxu0 0.0
        %1476 = vmatprep.subr.mxu0 0.0
        %1477 = vmatpush1.msra.mxu0 0.0
        %1478 = vmatprep.subr.mxu0 0.0
        %1479 = vmatpush1.msra.mxu0 0.0
        %1480 = vmatprep.subr.mxu0 0.0
        %1481 = vmatpush1.msra.mxu0 0.0
        %1482 = vmatprep.subr.mxu0 0.0
        %1483 = vmatpush1.msra.mxu0 0.0
        %1484 = vmatprep.subr.mxu0 0.0
        %1485 = vmatpush1.msra.mxu0 0.0
        %1486 = vmatprep.subr.mxu0 0.0
        %1487 = vmatpush1.msra.mxu0 0.0
        %1488 = vmatprep.subr.mxu0 0.0
        %1489 = vmatpush1.msra.mxu0 0.0
        %1490 = vmatprep.subr.mxu0 0.0
        %1491 = vmatpush1.msra.mxu0 0.0
        %1492 = vmatprep.subr.mxu0 0.0
        %1493 = vmatpush1.msra.mxu0 0.0
        %1494 = vmatprep.subr.mxu0 0.0
        %1495 = vmatpush1.msra.mxu0 0.0
        %1496 = vmatprep.subr.mxu0 0.0
        %1497 = vmatpush1.msra.mxu0 0.0
        %1498 = vmatprep.subr.mxu0 0.0
        %1499 = vmatpush1.msra.mxu0 0.0
        %1500 = vmatprep.subr.mxu0 0.0
        %1501 = vmatpush1.msra.mxu0 0.0
        %1502 = vmatprep.subr.mxu0 0.0
        %1503 = vmatpush1.msra.mxu0 0.0
        %1504 = vmatprep.subr.mxu0 0.0
        %1505 = vmatpush1.msra.mxu0 0.0
        %1506 = vmatprep.subr.mxu0 0.0
        %1507 = vmatpush1.msra.mxu0 0.0
        %1508 = vmatprep.mubr.f32.mxu0 0.0
        %1509 = vmatmul.mubr.f32.gmra.mrb[0].mxu0 %v1442
        %v1510 = vpop.f32.mrb[0].mxu0
        %v1511 = vadd.f32 %v1439, %v1510
        %v1512 = vpop.f32.mrb[0].mxu0
        %1513 = vdwg.mxu0
        %1514 = vst.msk [vmem:[%s513] sm:$0xff] %vm523, %v1511
        %s1515 = sand.u32 %s251, 1
        %s1516 = scalar_lea.sflag [#allocation4], %s1515
        %s1517 = sand.u32 %s251, 1
        %s1518 = smul.addr %s1517, 8
        %s1519 = scalar_lea.vmem [#allocation16], %s1518
        // Predicated region
        $region89: #{tpu_custom_call.1} parent=55 // pred_check
          %p1520 = pneg %p261
        $region90: #{tpu_custom_call.1} parent=55 // pred_check_branch
          %1522 = sbr.rel (%p1520) target = $region92
        $region91: #{tpu_custom_call.1} parent=55 // pred_region
          %s1524 = ssub.s32 128, 128
          %1525 = vsyncadd %s1516, %s1524
          %s1526 = smul.addr %s34, 128
          %s1527 = scalar_lea.hbm %s9, %s1526
          %s1529 = sshll.u32 %s1519, 4
          %s1530 = int_to_ptr.vmem [resolvable:$true] %s1529
          %1532 = dma.vmem_to_hbm [thread:$0]  %s1530, 128, %s1527, %s1516
        $region92: #{tpu_custom_call.1} parent=55 // pred_fallthru
          _
      $region56: #{tpu_custom_call.1} parent=5 // pred_fallthru
        _
      %p1533 = scmp.le.s32.totalorder 2, %s29
      // Predicated region
      $region93: #{tpu_custom_call.1} parent=5 // pred_check
        %p1534 = pneg %p1533
      $region94: #{tpu_custom_call.1} parent=5 // pred_check_branch
        %1536 = sbr.rel (%p1534) target = $region96
      $region95: #{tpu_custom_call.1} parent=5 // pred_region
        %s1537 = ssub.s32 %s29, 2
        // Predicated region
        $region97: #{tpu_custom_call.1} parent=95 // pred_check
          %p1538 = pneg %p267
        $region98: #{tpu_custom_call.1} parent=95 // pred_check_branch
          %1540 = sbr.rel (%p1538) target = $region100
        $region99: #{tpu_custom_call.1} parent=95 // pred_region
          %s1541 = sand.u32 %s252, 1
          %s1542 = scalar_lea.sflag [#allocation4], %s1541
          %s1543 = sand.u32 %s252, 1
          %s1544 = smul.addr %s1543, 8
          %s1545 = scalar_lea.vmem [#allocation16], %s1544
          %1546 = dma.done %s1542, 128
        $region100: #{tpu_custom_call.1} parent=95 // pred_fallthru
          _
      $region96: #{tpu_custom_call.1} parent=5 // pred_fallthru
        _
    $region6: #{tpu_custom_call.1} parent=1 // loop_footer
      %s33 = sadd.s32 1, %s29
    $region7: #{tpu_custom_call.1} parent=1 // loop_footer_branch
      %28 = sbr.rel target = $region3
    $region8: #{tpu_custom_call.1} parent=1 // loop_exit
      _
    %1547 = vsyncpa [#allocation3], 1
    %s1548 = scalar_lea.sflag [#allocation3], 1
    %1549 = vsyncpa %s1548, 1
    %1550 = vsyncpa [#allocation6], 1
    %s1551 = scalar_lea.sflag [#allocation6], 1
    %1552 = vsyncpa %s1551, 1
    %1553 = vsyncpa [#allocation9], 1
    %s1554 = scalar_lea.sflag [#allocation9], 1
    %1555 = vsyncpa %s1554, 1
    %1556 = vsyncpa [#allocation12], 1
    %1557 = vsyncpa [#allocation15], 1
    %1558 = vsyncpa [#allocation4], 1
    %s1559 = scalar_lea.sflag [#allocation4], 1
    %1560 = vsyncpa %s1559, 1

</llo_original>
